<compile_context>
chip_gen: v7x
topology: tpu7x:2x2x1
jax: 0.10.0
libtpu: 0.0.40
codegen_flags: <defaults>
</compile_context>

<pallas_src>
import jax
import jax.numpy as jnp
from jax.experimental import pallas as pl
from jax.experimental.pallas import tpu as pltpu

H1_PAD = 128          # 100 padded to one lane tile
H2_PAD = 384          # 300 padded to 3 lane tiles
OUT_DIM = 28 * 28     # 784 (== full array dim, legal as a block last-dim)
MAX_TILE = 1024       # max batch-tile rows (footprint ~10 MB, fits all gens)


def _cdiv(a, b):
    return -(-a // b)


def _round_up(x, m):
    return (x + m - 1) // m * m


def decoder_vae_kernel(z_ref, w1_ref, b1_ref, w2_ref, b2_ref, w3_ref, b3_ref,
                       o_ref):
    # Layer 1: Linear(z_dim -> 128pad) + ReLU.  bf16 operands, f32 accumulate.
    h1 = jnp.dot(z_ref[...], w1_ref[...],
                 preferred_element_type=jnp.float32) + b1_ref[...]
    h1 = jnp.maximum(h1, 0.0)

    # Layer 2: Linear(128pad -> 384pad) + ReLU.
    h2 = jnp.dot(h1.astype(jnp.bfloat16), w2_ref[...],
                 preferred_element_type=jnp.float32) + b2_ref[...]
    h2 = jnp.maximum(h2, 0.0)

    # Layer 3: Linear(384pad -> 784) + sigmoid.
    logits = jnp.dot(h2.astype(jnp.bfloat16), w3_ref[...],
                     preferred_element_type=jnp.float32) + b3_ref[...]
    # sigmoid(x) = 1 / (1 + exp(-x)); exp and the approximate reciprocal both
    # issue on the EUP slot, keeping the VALU slots free for bias/ReLU work.
    sig = pl.reciprocal(1.0 + jnp.exp(-logits), approx=True)
    o_ref[...] = sig.astype(o_ref.dtype)


def _pad_params(params):
    """Zero-pad hidden dims to lane multiples; weights -> bf16, biases -> f32."""
    w1, b1, w2, b2, w3, b3 = params
    z_dim, h1 = w1.shape
    _, h2 = w2.shape
    out_dim = w3.shape[1]
    bf = jnp.bfloat16
    w1p = jnp.zeros((z_dim, H1_PAD), bf).at[:, :h1].set(w1.astype(bf))
    b1p = jnp.zeros((1, H1_PAD), jnp.float32).at[:, :h1].set(b1.astype(jnp.float32))
    w2p = jnp.zeros((H1_PAD, H2_PAD), bf).at[:h1, :h2].set(w2.astype(bf))
    b2p = jnp.zeros((1, H2_PAD), jnp.float32).at[:, :h2].set(b2.astype(jnp.float32))
    w3p = jnp.zeros((H2_PAD, out_dim), bf).at[:h2, :].set(w3.astype(bf))
    b3p = b3.astype(jnp.float32)
    return w1p, b1p, w2p, b2p, w3p, b3p


def _choose_batch_tile(B, max_tile=MAX_TILE):
    """Balanced batch tiling.

    - tiles never exceed `max_tile` rows,
    - for B > 128 we force >= 2 grid steps so the parallel batch axis can be
      split across both v7x TensorCores,
    - tiles are near-equal (cdiv split) so the last tile is never mostly
      padding (B=520 -> 2 tiles of 264 rows, only 8 padded rows total).
    """
    n_tiles = _cdiv(B, max_tile)
    if B > 128 and n_tiles < 2:
        n_tiles = 2
    return _round_up(_cdiv(B, n_tiles), 8)


def decoder_vae_forward(z, params, *, batch_tile=None, out_dtype=jnp.bfloat16):
    """Fused decoder MLP.  z: [B, z_dim] float32 (or bf16)."""
    w1p, b1p, w2p, b2p, w3p, b3p = _pad_params(params)
    out_dim = w3p.shape[1]
    B, z_dim = z.shape

    if batch_tile is None:
        batch_tile = _choose_batch_tile(B)
    batch_tile = _round_up(batch_tile, 8)
    B_pad = _round_up(B, batch_tile)

    zb = z.astype(jnp.bfloat16)
    if B_pad != B:
        zb = jnp.zeros((B_pad, z_dim), jnp.bfloat16).at[:B].set(zb)

    grid = (B_pad // batch_tile,)

    def full_spec(arr):
        nd = arr.ndim
        return pl.BlockSpec(arr.shape, lambda i, _nd=nd: (0,) * _nd)

    # Scoped-VMEM budget: double-buffered z/out tiles + params (x2, pipeline
    # double-buffers them too) + f32 intermediates, 1.5x headroom, clamped to
    # [16 MiB, 48 MiB] (48 MiB cap keeps headroom under v7x's 64 MiB VMEM).
    param_bytes = sum(int(a.size) * a.dtype.itemsize
                      for a in (w1p, b1p, w2p, b2p, w3p, b3p))
    out_itemsize = jnp.dtype(out_dtype).itemsize
    tile_bytes = (2 * batch_tile * z_dim * 2
                  + 2 * batch_tile * out_dim * out_itemsize
                  + 2 * param_bytes
                  + batch_tile * (H1_PAD + H2_PAD + out_dim) * 4)
    vmem_limit = min(max(int(tile_bytes * 1.5), 16 * 1024 * 1024),
                     48 * 1024 * 1024)

    out = pl.pallas_call(
        decoder_vae_kernel,
        out_shape=jax.ShapeDtypeStruct((B_pad, out_dim), out_dtype),
        grid_spec=pltpu.PrefetchScalarGridSpec(
            num_scalar_prefetch=0,
            grid=grid,
            in_specs=[
                pl.BlockSpec((batch_tile, z_dim), lambda i: (i, 0)),
                full_spec(w1p), full_spec(b1p),
                full_spec(w2p), full_spec(b2p),
                full_spec(w3p), full_spec(b3p),
            ],
            out_specs=pl.BlockSpec((batch_tile, out_dim), lambda i: (i, 0)),
        ),
        compiler_params=pltpu.CompilerParams(
            dimension_semantics=("parallel",),
            vmem_limit_bytes=vmem_limit),
    )(zb, w1p, b1p, w2p, b2p, w3p, b3p)

    return out[:B] if B_pad != B else out


def init_params(key, z_dim):
    """Deterministic init matching torch.nn.Linear (stored transposed [in, out])."""
    dims = [(z_dim, 100), (100, 300), (300, OUT_DIM)]
    params = []
    for fan_in, fan_out in dims:
        key, kw, kb = jax.random.split(key, 3)
        bound = 1.0 / jnp.sqrt(fan_in)
        w = jax.random.uniform(kw, (fan_in, fan_out), jnp.float32,
                               minval=-bound, maxval=bound)
        b = jax.random.uniform(kb, (1, fan_out), jnp.float32,
                               minval=-bound, maxval=bound)
        params += [w, b]
    return tuple(params)


def reference_forward(z, params):
    """Pure-JAX reference with the same bf16-operand / f32-accumulate scheme."""
    w1, b1, w2, b2, w3, b3 = params
    bf = jnp.bfloat16
    h1 = jnp.maximum(jnp.dot(z.astype(bf), w1.astype(bf),
                             preferred_element_type=jnp.float32) + b1, 0.0)
    h2 = jnp.maximum(jnp.dot(h1.astype(bf), w2.astype(bf),
                             preferred_element_type=jnp.float32) + b2, 0.0)
    logits = jnp.dot(h2.astype(bf), w3.astype(bf),
                     preferred_element_type=jnp.float32) + b3
    return jax.nn.sigmoid(logits)


if __name__ == "__main__":
    key = jax.random.PRNGKey(0)
    kz, kp, kz2 = jax.random.split(key, 3)

    z_dim = 32
    params = init_params(kp, z_dim)

    # Small single-tile smoke test, f32 output (matches module dtype exactly).
    B = 8
    z = jax.random.normal(kz, (B, z_dim), dtype=jnp.float32)
    out = jax.block_until_ready(
        decoder_vae_forward(z, params, out_dtype=jnp.float32))
    ref = reference_forward(z, params)
    assert out.shape == (B, OUT_DIM)
    assert out.dtype == jnp.float32
    assert jnp.allclose(out, ref, atol=1e-2, rtol=1e-2)

    # Tiled path: B=520 -> balanced tiles of 264 rows, grid=(2,), bf16 output.
    B2 = 520
    z2 = jax.random.normal(kz2, (B2, z_dim), dtype=jnp.float32)
    out2 = jax.block_until_ready(decoder_vae_forward(z2, params))
    ref2 = reference_forward(z2, params)
    assert out2.shape == (B2, OUT_DIM)
    assert out2.dtype == jnp.bfloat16
    assert jnp.allclose(out2.astype(jnp.float32), ref2, atol=3e-2, rtol=3e-2)

    print("KERNEL_OK")
</pallas_src>

<mosaic_0001>
module attributes {stable_mosaic.version = 11 : i64} {
  func.func @decoder_vae_kernel(%arg0: i32, %arg1: memref<8x32xbf16, #tpu.memory_space<vmem>>, %arg2: memref<32x128xbf16, #tpu.memory_space<vmem>>, %arg3: memref<1x128xf32, #tpu.memory_space<vmem>>, %arg4: memref<128x384xbf16, #tpu.memory_space<vmem>>, %arg5: memref<1x384xf32, #tpu.memory_space<vmem>>, %arg6: memref<384x784xbf16, #tpu.memory_space<vmem>>, %arg7: memref<1x784xf32, #tpu.memory_space<vmem>>, %arg8: memref<8x784xf32, #tpu.memory_space<vmem>>) attributes {dimension_semantics = [#tpu.dimension_semantics<parallel>], iteration_bounds = array<i64: 1>, scalar_prefetch = 0 : i64, scratch_operands = 0 : i64, tpu.core_type = #tpu.core_type<tc>, window_params = [{transform_indices = @transform_0, window_bounds = array<i64: 8, 32>}, {pipeline_mode = #tpu.pipeline_mode<synchronous>, transform_indices = @transform_1, window_bounds = array<i64: 32, 128>}, {pipeline_mode = #tpu.pipeline_mode<synchronous>, transform_indices = @transform_2, window_bounds = array<i64: 1, 128>}, {pipeline_mode = #tpu.pipeline_mode<synchronous>, transform_indices = @transform_3, window_bounds = array<i64: 128, 384>}, {pipeline_mode = #tpu.pipeline_mode<synchronous>, transform_indices = @transform_4, window_bounds = array<i64: 1, 384>}, {pipeline_mode = #tpu.pipeline_mode<synchronous>, transform_indices = @transform_5, window_bounds = array<i64: 384, 784>}, {pipeline_mode = #tpu.pipeline_mode<synchronous>, transform_indices = @transform_6, window_bounds = array<i64: 1, 784>}, {transform_indices = @transform_7, window_bounds = array<i64: 8, 784>}]} {
    %c0 = arith.constant 0 : index
    %c0_0 = arith.constant 0 : index
    %0 = vector.load %arg1[%c0, %c0_0] : memref<8x32xbf16, #tpu.memory_space<vmem>>, vector<8x32xbf16>
    %c0_1 = arith.constant 0 : index
    %c0_2 = arith.constant 0 : index
    %1 = vector.load %arg2[%c0_1, %c0_2] : memref<32x128xbf16, #tpu.memory_space<vmem>>, vector<32x128xbf16>
    %cst = arith.constant dense<0.000000e+00> : vector<8x128xf32>
    %2 = tpu.matmul %0, %1, %cst {dimension_numbers = #tpu.dot_dimension_numbers<[1], [0], [0], [1], [0, 0, 1, 1], [], []>} : vector<8x32xbf16>, vector<32x128xbf16>, vector<8x128xf32> -> vector<8x128xf32>
    %c0_3 = arith.constant 0 : index
    %c0_4 = arith.constant 0 : index
    %3 = vector.load %arg3[%c0_3, %c0_4] : memref<1x128xf32, #tpu.memory_space<vmem>>, vector<1x128xf32>
    %4 = vector.broadcast %3 : vector<1x128xf32> to vector<8x128xf32>
    %5 = arith.addf %2, %4 : vector<8x128xf32>
    %cst_5 = arith.constant 0.000000e+00 : f32
    %6 = vector.broadcast %cst_5 : f32 to vector<8x128xf32>
    %7 = arith.maximumf %5, %6 : vector<8x128xf32>
    %8 = arith.truncf %7 : vector<8x128xf32> to vector<8x128xbf16>
    %c0_6 = arith.constant 0 : index
    %c0_7 = arith.constant 0 : index
    %9 = vector.load %arg4[%c0_6, %c0_7] : memref<128x384xbf16, #tpu.memory_space<vmem>>, vector<128x384xbf16>
    %cst_8 = arith.constant dense<0.000000e+00> : vector<8x384xf32>
    %10 = tpu.matmul %8, %9, %cst_8 {dimension_numbers = #tpu.dot_dimension_numbers<[1], [0], [0], [1], [0, 0, 1, 1], [], []>} : vector<8x128xbf16>, vector<128x384xbf16>, vector<8x384xf32> -> vector<8x384xf32>
    %c0_9 = arith.constant 0 : index
    %c0_10 = arith.constant 0 : index
    %11 = vector.load %arg5[%c0_9, %c0_10] : memref<1x384xf32, #tpu.memory_space<vmem>>, vector<1x384xf32>
    %12 = vector.broadcast %11 : vector<1x384xf32> to vector<8x384xf32>
    %13 = arith.addf %10, %12 : vector<8x384xf32>
    %cst_11 = arith.constant 0.000000e+00 : f32
    %14 = vector.broadcast %cst_11 : f32 to vector<8x384xf32>
    %15 = arith.maximumf %13, %14 : vector<8x384xf32>
    %16 = arith.truncf %15 : vector<8x384xf32> to vector<8x384xbf16>
    %c0_12 = arith.constant 0 : index
    %c0_13 = arith.constant 0 : index
    %17 = vector.load %arg6[%c0_12, %c0_13] : memref<384x784xbf16, #tpu.memory_space<vmem>>, vector<384x784xbf16>
    %cst_14 = arith.constant dense<0.000000e+00> : vector<8x784xf32>
    %18 = tpu.matmul %16, %17, %cst_14 {dimension_numbers = #tpu.dot_dimension_numbers<[1], [0], [0], [1], [0, 0, 1, 1], [], []>} : vector<8x384xbf16>, vector<384x784xbf16>, vector<8x784xf32> -> vector<8x784xf32>
    %c0_15 = arith.constant 0 : index
    %c0_16 = arith.constant 0 : index
    %19 = vector.load %arg7[%c0_15, %c0_16] : memref<1x784xf32, #tpu.memory_space<vmem>>, vector<1x784xf32>
    %20 = vector.broadcast %19 : vector<1x784xf32> to vector<8x784xf32>
    %21 = arith.addf %18, %20 : vector<8x784xf32>
    %cst_17 = arith.constant 0.000000e+00 : f32
    %22 = vector.broadcast %cst_17 : f32 to vector<8x784xf32>
    %23 = arith.subf %22, %21 : vector<8x784xf32>
    %24 = math.exp %23 : vector<8x784xf32>
    %cst_18 = arith.constant 1.000000e+00 : f32
    %25 = vector.broadcast %cst_18 : f32 to vector<8x784xf32>
    %26 = arith.addf %25, %24 : vector<8x784xf32>
    %27 = tpu.reciprocal %26 {approx = true} : vector<8x784xf32> -> vector<8x784xf32>
    %c0_19 = arith.constant 0 : index
    %c0_20 = arith.constant 0 : index
    %28 = vector.load %arg8[%c0_19, %c0_20] : memref<8x784xf32, #tpu.memory_space<vmem>>, vector<8x784xf32>
    tpu.vector_store %arg8[%c0_19, %c0_20], %27 {strides = array<i32>} : memref<8x784xf32, #tpu.memory_space<vmem>>, vector<8x784xf32>,
    return
  }
  func.func @transform_0(%arg0: i32) -> (i32, i32) {
    %c0_i32 = arith.constant 0 : i32
    %c0_i32_0 = arith.constant 0 : i32
    return %arg0, %c0_i32 : i32, i32
  }
  func.func @transform_1(%arg0: i32) -> (i32, i32) {
    %c0_i32 = arith.constant 0 : i32
    %c0_i32_0 = arith.constant 0 : i32
    %c0_i32_1 = arith.constant 0 : i32
    return %c0_i32, %c0_i32_0 : i32, i32
  }
  func.func @transform_2(%arg0: i32) -> (i32, i32) {
    %c0_i32 = arith.constant 0 : i32
    %c0_i32_0 = arith.constant 0 : i32
    %c0_i32_1 = arith.constant 0 : i32
    return %c0_i32, %c0_i32_0 : i32, i32
  }
  func.func @transform_3(%arg0: i32) -> (i32, i32) {
    %c0_i32 = arith.constant 0 : i32
    %c0_i32_0 = arith.constant 0 : i32
    %c0_i32_1 = arith.constant 0 : i32
    return %c0_i32, %c0_i32_0 : i32, i32
  }
  func.func @transform_4(%arg0: i32) -> (i32, i32) {
    %c0_i32 = arith.constant 0 : i32
    %c0_i32_0 = arith.constant 0 : i32
    %c0_i32_1 = arith.constant 0 : i32
    return %c0_i32, %c0_i32_0 : i32, i32
  }
  func.func @transform_5(%arg0: i32) -> (i32, i32) {
    %c0_i32 = arith.constant 0 : i32
    %c0_i32_0 = arith.constant 0 : i32
    %c0_i32_1 = arith.constant 0 : i32
    return %c0_i32, %c0_i32_0 : i32, i32
  }
  func.func @transform_6(%arg0: i32) -> (i32, i32) {
    %c0_i32 = arith.constant 0 : i32
    %c0_i32_0 = arith.constant 0 : i32
    %c0_i32_1 = arith.constant 0 : i32
    return %c0_i32, %c0_i32_0 : i32, i32
  }
  func.func @transform_7(%arg0: i32) -> (i32, i32) {
    %c0_i32 = arith.constant 0 : i32
    %c0_i32_0 = arith.constant 0 : i32
    return %arg0, %c0_i32 : i32, i32
  }
}

</mosaic_0001>

<llo_original>
// kernel: tpu_custom_call.1
$region0: #{tpu_custom_call.1}
  #allocation0 [shape = 'u32[]', space=smem, size = 0x4, offset = 0x4, fixed_abs, tag = 'smem constant byte address 0x4 - core index']
  #allocation1 [shape = 'u32[144,128]{1,0:T(1,128)}', space=vmem, size = 0x12000, scoped, tag = 'internal scratch']
  %s0 = inlined_call_operand.vmem [shape: bf16[8,32], index: 0, kind: input, shape index: {}]
  %s1 = inlined_call_operand.vmem [shape: bf16[32,128], index: 1, kind: input, shape index: {}]
  %s2 = inlined_call_operand.vmem [shape: f32[1,128], index: 2, kind: input, shape index: {}]
  %s3 = inlined_call_operand.vmem [shape: bf16[128,384], index: 3, kind: input, shape index: {}]
  %s4 = inlined_call_operand.vmem [shape: f32[1,384], index: 4, kind: input, shape index: {}]
  %s5 = inlined_call_operand.vmem [shape: bf16[384,784], index: 5, kind: input, shape index: {}]
  %s6 = inlined_call_operand.vmem [shape: f32[1,784], index: 6, kind: input, shape index: {}]
  %s7 = inlined_call_operand.hbm [shape: f32[8,784], index: 7, kind: output, shape index: {}]
  %s8 = sld [smem:[#allocation0]]
  $region38: #{tpu_custom_call.1} parent=0
    _
  %s10 = ssub.s32 1, %s8
  %s11 = scalar_select 0, %s10, %s8
  $region1: #{tpu_custom_call.1} parent=0
    #allocation2 [shape = 'u8[28672]{0}', space=vmem, size = 0x7000, scoped, tag = 'output window, operand 0, single buffered']
    #allocation3 [shape = 's32[1]{0}', space=sflag, size = 0x4, scoped, tag = 'scoped memory for tpu_custom_call.1']
    %12 = vsyncpa [#allocation3], 0
    // Predicated region
    $region2: #{tpu_custom_call.1} parent=1 // pred_check
      _
    $region3: #{tpu_custom_call.1} parent=1 // pred_check_branch
      %14 = sbr.rel (0) target = $region5
    $region4: #{tpu_custom_call.1} parent=1 // pred_region
      _
    $region5: #{tpu_custom_call.1} parent=1 // pred_fallthru
      _
    // Predicated region
    $region6: #{tpu_custom_call.1} parent=1 // pred_check
      _
    $region7: #{tpu_custom_call.1} parent=1 // pred_check_branch
      %16 = sbr.rel (0) target = $region9
    $region8: #{tpu_custom_call.1} parent=1 // pred_region
      _
    $region9: #{tpu_custom_call.1} parent=1 // pred_fallthru
      _
    // Predicated region
    $region10: #{tpu_custom_call.1} parent=1 // pred_check
      _
    $region11: #{tpu_custom_call.1} parent=1 // pred_check_branch
      %18 = sbr.rel (0) target = $region13
    $region12: #{tpu_custom_call.1} parent=1 // pred_region
      _
    $region13: #{tpu_custom_call.1} parent=1 // pred_fallthru
      _
    // Predicated region
    $region14: #{tpu_custom_call.1} parent=1 // pred_check
      _
    $region15: #{tpu_custom_call.1} parent=1 // pred_check_branch
      %20 = sbr.rel (0) target = $region17
    $region16: #{tpu_custom_call.1} parent=1 // pred_region
      _
    $region17: #{tpu_custom_call.1} parent=1 // pred_fallthru
      _
    // Predicated region
    $region18: #{tpu_custom_call.1} parent=1 // pred_check
      _
    $region19: #{tpu_custom_call.1} parent=1 // pred_check_branch
      %22 = sbr.rel (0) target = $region21
    $region20: #{tpu_custom_call.1} parent=1 // pred_region
      _
    $region21: #{tpu_custom_call.1} parent=1 // pred_fallthru
      _
    // Predicated region
    $region22: #{tpu_custom_call.1} parent=1 // pred_check
      _
    $region23: #{tpu_custom_call.1} parent=1 // pred_check_branch
      %24 = sbr.rel (0) target = $region25
    $region24: #{tpu_custom_call.1} parent=1 // pred_region
      _
    $region25: #{tpu_custom_call.1} parent=1 // pred_fallthru
      _
    // Predicated region
    $region26: #{tpu_custom_call.1} parent=1 // pred_check
      _
    $region27: #{tpu_custom_call.1} parent=1 // pred_check_branch
      %26 = sbr.rel (0) target = $region29
    $region28: #{tpu_custom_call.1} parent=1 // pred_region
      _
    $region29: #{tpu_custom_call.1} parent=1 // pred_fallthru
      _
    %v28 = vld [vmem:[%s0] sm:$0xf]
    %v29 = vld [vmem:[%s1] sm:$0xf]
    %v30 = vld [vmem:[%s1 + $0x4] sm:$0xf]
    %v31 = vld [vmem:[%s1 + $0x8] sm:$0xf]
    %v32 = vld [vmem:[%s1 + $0xc] sm:$0xf]
    %v33 = vld [vmem:[%s2] sm:$0x1]
    %v35 = vlaneseq
    %v36 = vshrl.u32 %v35, 7
    %v37 = vsub.s32 0, %v36
    %v38 = vrot.slane %v33, %v37
    %v44 = vunpack.c.l.b16 %v29
    %v45 = vunpack.c.l.b16 %v30
    %v46 = vunpack.c.l.b16 %v31
    %v47 = vunpack.c.l.b16 %v32
    %v48 = vpack.c.b16 %v45, %v44
    %v49 = vpack.c.b16 %v47, %v46
    %vm52 = vcmask 261120
    %v54 = vsel %vm52, %v28, 0
    %56 = vmatprep.subr.bf16.mxu0 0
    %57 = vmatpush1.bf16.msra.mxu0 %v48
    %58 = vmatprep.subr.bf16.mxu0 0
    %59 = vmatpush1.bf16.msra.mxu0 %v49
    %60 = vmatprep.subr.bf16.mxu0 0
    %61 = vmatpush1.bf16.msra.mxu0 0
    %62 = vmatprep.subr.bf16.mxu0 0
    %63 = vmatpush1.bf16.msra.mxu0 0
    %64 = vmatprep.subr.bf16.mxu0 0
    %65 = vmatpush1.bf16.msra.mxu0 0
    %66 = vmatprep.subr.bf16.mxu0 0
    %67 = vmatpush1.bf16.msra.mxu0 0
    %68 = vmatprep.subr.bf16.mxu0 0
    %69 = vmatpush1.bf16.msra.mxu0 0
    %70 = vmatprep.subr.bf16.mxu0 0
    %71 = vmatpush1.bf16.msra.mxu0 0
    %72 = vmatprep.subr.bf16.mxu0 0
    %73 = vmatpush1.bf16.msra.mxu0 0
    %74 = vmatprep.subr.bf16.mxu0 0
    %75 = vmatpush1.bf16.msra.mxu0 0
    %76 = vmatprep.subr.bf16.mxu0 0
    %77 = vmatpush1.bf16.msra.mxu0 0
    %78 = vmatprep.subr.bf16.mxu0 0
    %79 = vmatpush1.bf16.msra.mxu0 0
    %80 = vmatprep.subr.bf16.mxu0 0
    %81 = vmatpush1.bf16.msra.mxu0 0
    %82 = vmatprep.subr.bf16.mxu0 0
    %83 = vmatpush1.bf16.msra.mxu0 0
    %84 = vmatprep.subr.bf16.mxu0 0
    %85 = vmatpush1.bf16.msra.mxu0 0
    %86 = vmatprep.subr.bf16.mxu0 0
    %87 = vmatpush1.bf16.msra.mxu0 0
    %88 = vmatprep.mubr.bf16.mxu0 0
    %89 = vmatmul.mubr.bf16.gmra.mrb[0].mxu0 %v54
    %v90 = vpop.f32.mrb[0].mxu0
    %v91 = vadd.f32 %v38, %v90
    %v92 = vpop.f32.mrb[0].mxu0
    %v93 = vpop.f32.mrb[0].mxu0
    %v94 = vpop.f32.mrb[0].mxu0
    %95 = vdwg.mxu0
    %v96 = vmax.f32 %v91, 0.0
    %v97 = vpack.c.bf16 %v96, %v96
    %v98 = vld [vmem:[%s3] sm:$0xff]
    %v99 = vld [vmem:[%s3 + $0x8] sm:$0xf]
    %v100 = vld [vmem:[%s3 + $0xc] sm:$0xff]
    %v101 = vld [vmem:[%s3 + $0x14] sm:$0xf]
    %v102 = vld [vmem:[%s3 + $0x18] sm:$0xff]
    %v103 = vld [vmem:[%s3 + $0x20] sm:$0xf]
    %v104 = vld [vmem:[%s3 + $0x24] sm:$0xff]
    %v105 = vld [vmem:[%s3 + $0x2c] sm:$0xf]
    %v106 = vld [vmem:[%s3 + $0x30] sm:$0xff]
    %v107 = vld [vmem:[%s3 + $0x38] sm:$0xf]
    %v108 = vld [vmem:[%s3 + $0x3c] sm:$0xff]
    %v109 = vld [vmem:[%s3 + $0x44] sm:$0xf]
    %v110 = vld [vmem:[%s3 + $0x48] sm:$0xff]
    %v111 = vld [vmem:[%s3 + $0x50] sm:$0xf]
    %v112 = vld [vmem:[%s3 + $0x54] sm:$0xff]
    %v113 = vld [vmem:[%s3 + $0x5c] sm:$0xf]
    %v114 = vld [vmem:[%s3 + $0x60] sm:$0xff]
    %v115 = vld [vmem:[%s3 + $0x68] sm:$0xf]
    %v116 = vld [vmem:[%s3 + $0x6c] sm:$0xff]
    %v117 = vld [vmem:[%s3 + $0x74] sm:$0xf]
    %v118 = vld [vmem:[%s3 + $0x78] sm:$0xff]
    %v119 = vld [vmem:[%s3 + $0x80] sm:$0xf]
    %v120 = vld [vmem:[%s3 + $0x84] sm:$0xff]
    %v121 = vld [vmem:[%s3 + $0x8c] sm:$0xf]
    %v122 = vld [vmem:[%s3 + $0x90] sm:$0xff]
    %v123 = vld [vmem:[%s3 + $0x98] sm:$0xf]
    %v124 = vld [vmem:[%s3 + $0x9c] sm:$0xff]
    %v125 = vld [vmem:[%s3 + $0xa4] sm:$0xf]
    %v126 = vld [vmem:[%s3 + $0xa8] sm:$0xff]
    %v127 = vld [vmem:[%s3 + $0xb0] sm:$0xf]
    %v128 = vld [vmem:[%s3 + $0xb4] sm:$0xff]
    %v129 = vld [vmem:[%s3 + $0xbc] sm:$0xf]
    %v130 = vld [vmem:[%s4] sm:$0x7]
    %v132 = vlaneseq
    %v133 = vshrl.u32 %v132, 7
    %v134 = vsub.s32 0, %v133
    %v135 = vrot.slane %v130, %v134
    %v136 = vlaneseq
    %v137 = vshrl.u32 %v136, 7
    %v138 = vsub.s32 1, %v137
    %v139 = vrot.slane %v130, %v138
    %v140 = vlaneseq
    %v141 = vshrl.u32 %v140, 7
    %v142 = vsub.s32 2, %v141
    %v143 = vrot.slane %v130, %v142
    %v179 = vunpack.c.l.b16 %v98
    %v180 = vunpack.c.h.b16 %v98
    %v181 = vunpack.c.l.b16 %v99
    %v182 = vunpack.c.l.b16 %v100
    %v183 = vunpack.c.h.b16 %v100
    %v184 = vunpack.c.l.b16 %v101
    %v185 = vunpack.c.l.b16 %v102
    %v186 = vunpack.c.h.b16 %v102
    %v187 = vunpack.c.l.b16 %v103
    %v188 = vunpack.c.l.b16 %v104
    %v189 = vunpack.c.h.b16 %v104
    %v190 = vunpack.c.l.b16 %v105
    %v191 = vunpack.c.l.b16 %v106
    %v192 = vunpack.c.h.b16 %v106
    %v193 = vunpack.c.l.b16 %v107
    %v194 = vunpack.c.l.b16 %v108
    %v195 = vunpack.c.h.b16 %v108
    %v196 = vunpack.c.l.b16 %v109
    %v197 = vunpack.c.l.b16 %v110
    %v198 = vunpack.c.h.b16 %v110
    %v199 = vunpack.c.l.b16 %v111
    %v200 = vunpack.c.l.b16 %v112
    %v201 = vunpack.c.h.b16 %v112
    %v202 = vunpack.c.l.b16 %v113
    %v203 = vunpack.c.l.b16 %v114
    %v204 = vunpack.c.h.b16 %v114
    %v205 = vunpack.c.l.b16 %v115
    %v206 = vunpack.c.l.b16 %v116
    %v207 = vunpack.c.h.b16 %v116
    %v208 = vunpack.c.l.b16 %v117
    %v209 = vunpack.c.l.b16 %v118
    %v210 = vunpack.c.h.b16 %v118
    %v211 = vunpack.c.l.b16 %v119
    %v212 = vunpack.c.l.b16 %v120
    %v213 = vunpack.c.h.b16 %v120
    %v214 = vunpack.c.l.b16 %v121
    %v215 = vunpack.c.l.b16 %v122
    %v216 = vunpack.c.h.b16 %v122
    %v217 = vunpack.c.l.b16 %v123
    %v218 = vunpack.c.l.b16 %v124
    %v219 = vunpack.c.h.b16 %v124
    %v220 = vunpack.c.l.b16 %v125
    %v221 = vunpack.c.l.b16 %v126
    %v222 = vunpack.c.h.b16 %v126
    %v223 = vunpack.c.l.b16 %v127
    %v224 = vunpack.c.l.b16 %v128
    %v225 = vunpack.c.h.b16 %v128
    %v226 = vunpack.c.l.b16 %v129
    %v227 = vpack.c.b16 %v182, %v179
    %v228 = vpack.c.b16 %v183, %v180
    %v229 = vpack.c.b16 %v184, %v181
    %v230 = vpack.c.b16 %v188, %v185
    %v231 = vpack.c.b16 %v189, %v186
    %v232 = vpack.c.b16 %v190, %v187
    %v233 = vpack.c.b16 %v194, %v191
    %v234 = vpack.c.b16 %v195, %v192
    %v235 = vpack.c.b16 %v196, %v193
    %v236 = vpack.c.b16 %v200, %v197
    %v237 = vpack.c.b16 %v201, %v198
    %v238 = vpack.c.b16 %v202, %v199
    %v239 = vpack.c.b16 %v206, %v203
    %v240 = vpack.c.b16 %v207, %v204
    %v241 = vpack.c.b16 %v208, %v205
    %v242 = vpack.c.b16 %v212, %v209
    %v243 = vpack.c.b16 %v213, %v210
    %v244 = vpack.c.b16 %v214, %v211
    %v245 = vpack.c.b16 %v218, %v215
    %v246 = vpack.c.b16 %v219, %v216
    %v247 = vpack.c.b16 %v220, %v217
    %v248 = vpack.c.b16 %v224, %v221
    %v249 = vpack.c.b16 %v225, %v222
    %v250 = vpack.c.b16 %v226, %v223
    %275 = vmatprep.subr.bf16.mxu0 %v228
    %276 = vmatpush1.bf16.msra.mxu0 %v227
    %277 = vmatprep.subr.bf16.mxu0 %v231
    %278 = vmatpush1.bf16.msra.mxu0 %v230
    %279 = vmatprep.subr.bf16.mxu0 %v234
    %280 = vmatpush1.bf16.msra.mxu0 %v233
    %281 = vmatprep.subr.bf16.mxu0 %v237
    %282 = vmatpush1.bf16.msra.mxu0 %v236
    %283 = vmatprep.subr.bf16.mxu0 %v240
    %284 = vmatpush1.bf16.msra.mxu0 %v239
    %285 = vmatprep.subr.bf16.mxu0 %v243
    %286 = vmatpush1.bf16.msra.mxu0 %v242
    %287 = vmatprep.subr.bf16.mxu0 %v246
    %288 = vmatpush1.bf16.msra.mxu0 %v245
    %289 = vmatprep.subr.bf16.mxu0 %v249
    %290 = vmatpush1.bf16.msra.mxu0 %v248
    %291 = vmatprep.subr.bf16.mxu0 0
    %292 = vmatpush1.bf16.msra.mxu0 0
    %293 = vmatprep.subr.bf16.mxu0 0
    %294 = vmatpush1.bf16.msra.mxu0 0
    %295 = vmatprep.subr.bf16.mxu0 0
    %296 = vmatpush1.bf16.msra.mxu0 0
    %297 = vmatprep.subr.bf16.mxu0 0
    %298 = vmatpush1.bf16.msra.mxu0 0
    %299 = vmatprep.subr.bf16.mxu0 0
    %300 = vmatpush1.bf16.msra.mxu0 0
    %301 = vmatprep.subr.bf16.mxu0 0
    %302 = vmatpush1.bf16.msra.mxu0 0
    %303 = vmatprep.subr.bf16.mxu0 0
    %304 = vmatpush1.bf16.msra.mxu0 0
    %305 = vmatprep.subr.bf16.mxu0 0
    %306 = vmatpush1.bf16.msra.mxu0 0
    %307 = vmatprep.mubr.bf16.mxu0 0
    %308 = vmatmul.mubr.bf16.gmra.mrb[0].mxu0 %v97
    %v309 = vpop.f32.mrb[0].mxu0
    %v310 = vadd.f32 %v135, %v309
    %v311 = vpop.f32.mrb[0].mxu0
    %v312 = vadd.f32 %v139, %v311
    %v313 = vpop.f32.mrb[0].mxu0
    %v314 = vpop.f32.mrb[0].mxu0
    %315 = vdwg.mxu0
    %316 = vmatprep.subr.bf16.mxu0 0
    %317 = vmatpush1.bf16.msra.mxu0 %v229
    %318 = vmatprep.subr.bf16.mxu0 0
    %319 = vmatpush1.bf16.msra.mxu0 %v232
    %320 = vmatprep.subr.bf16.mxu0 0
    %321 = vmatpush1.bf16.msra.mxu0 %v235
    %322 = vmatprep.subr.bf16.mxu0 0
    %323 = vmatpush1.bf16.msra.mxu0 %v238
    %324 = vmatprep.subr.bf16.mxu0 0
    %325 = vmatpush1.bf16.msra.mxu0 %v241
    %326 = vmatprep.subr.bf16.mxu0 0
    %327 = vmatpush1.bf16.msra.mxu0 %v244
    %328 = vmatprep.subr.bf16.mxu0 0
    %329 = vmatpush1.bf16.msra.mxu0 %v247
    %330 = vmatprep.subr.bf16.mxu0 0
    %331 = vmatpush1.bf16.msra.mxu0 %v250
    %332 = vmatprep.subr.bf16.mxu0 0
    %333 = vmatpush1.bf16.msra.mxu0 0
    %334 = vmatprep.subr.bf16.mxu0 0
    %335 = vmatpush1.bf16.msra.mxu0 0
    %336 = vmatprep.subr.bf16.mxu0 0
    %337 = vmatpush1.bf16.msra.mxu0 0
    %338 = vmatprep.subr.bf16.mxu0 0
    %339 = vmatpush1.bf16.msra.mxu0 0
    %340 = vmatprep.subr.bf16.mxu0 0
    %341 = vmatpush1.bf16.msra.mxu0 0
    %342 = vmatprep.subr.bf16.mxu0 0
    %343 = vmatpush1.bf16.msra.mxu0 0
    %344 = vmatprep.subr.bf16.mxu0 0
    %345 = vmatpush1.bf16.msra.mxu0 0
    %346 = vmatprep.subr.bf16.mxu0 0
    %347 = vmatpush1.bf16.msra.mxu0 0
    %348 = vmatprep.mubr.bf16.mxu0 0
    %349 = vmatmul.mubr.bf16.gmra.mrb[0].mxu0 %v97
    %v350 = vpop.f32.mrb[0].mxu0
    %v351 = vadd.f32 %v143, %v350
    %v352 = vpop.f32.mrb[0].mxu0
    %v353 = vpop.f32.mrb[0].mxu0
    %v354 = vpop.f32.mrb[0].mxu0
    %355 = vdwg.mxu0
    %v356 = vmax.f32 %v310, 0.0
    %v357 = vmax.f32 %v312, 0.0
    %v358 = vmax.f32 %v351, 0.0
    %v359 = vpack.c.bf16 %v356, %v356
    %v360 = vpack.c.bf16 %v357, %v357
    %v361 = vpack.c.bf16 %v358, %v358
    %v362 = vld [vmem:[%s5] sm:$0xff]
    %v363 = vld [vmem:[%s5 + $0x8] sm:$0xff]
    %v364 = vld [vmem:[%s5 + $0x10] sm:$0xff]
    %v365 = vld [vmem:[%s5 + $0x18] sm:$0xf]
    %v366 = vld [vmem:[%s5 + $0x1c] sm:$0xff]
    %v367 = vld [vmem:[%s5 + $0x24] sm:$0xff]
    %v368 = vld [vmem:[%s5 + $0x2c] sm:$0xff]
    %v369 = vld [vmem:[%s5 + $0x34] sm:$0xf]
    %v370 = vld [vmem:[%s5 + $0x38] sm:$0xff]
    %v371 = vld [vmem:[%s5 + $0x40] sm:$0xff]
    %v372 = vld [vmem:[%s5 + $0x48] sm:$0xff]
    %v373 = vld [vmem:[%s5 + $0x50] sm:$0xf]
    %v374 = vld [vmem:[%s5 + $0x54] sm:$0xff]
    %v375 = vld [vmem:[%s5 + $0x5c] sm:$0xff]
    %v376 = vld [vmem:[%s5 + $0x64] sm:$0xff]
    %v377 = vld [vmem:[%s5 + $0x6c] sm:$0xf]
    %v378 = vld [vmem:[%s5 + $0x70] sm:$0xff]
    %v379 = vld [vmem:[%s5 + $0x78] sm:$0xff]
    %v380 = vld [vmem:[%s5 + $0x80] sm:$0xff]
    %v381 = vld [vmem:[%s5 + $0x88] sm:$0xf]
    %v382 = vld [vmem:[%s5 + $0x8c] sm:$0xff]
    %v383 = vld [vmem:[%s5 + $0x94] sm:$0xff]
    %v384 = vld [vmem:[%s5 + $0x9c] sm:$0xff]
    %v385 = vld [vmem:[%s5 + $0xa4] sm:$0xf]
    %v386 = vld [vmem:[%s5 + $0xa8] sm:$0xff]
    %v387 = vld [vmem:[%s5 + $0xb0] sm:$0xff]
    %v388 = vld [vmem:[%s5 + $0xb8] sm:$0xff]
    %v389 = vld [vmem:[%s5 + $0xc0] sm:$0xf]
    %v390 = vld [vmem:[%s5 + $0xc4] sm:$0xff]
    %v391 = vld [vmem:[%s5 + $0xcc] sm:$0xff]
    %v392 = vld [vmem:[%s5 + $0xd4] sm:$0xff]
    %v393 = vld [vmem:[%s5 + $0xdc] sm:$0xf]
    %v394 = vld [vmem:[%s5 + $0xe0] sm:$0xff]
    %v395 = vld [vmem:[%s5 + $0xe8] sm:$0xff]
    %v396 = vld [vmem:[%s5 + $0xf0] sm:$0xff]
    %v397 = vld [vmem:[%s5 + $0xf8] sm:$0xf]
    %v398 = vld [vmem:[%s5 + $0xfc] sm:$0xff]
    %v399 = vld [vmem:[%s5 + $0x104] sm:$0xff]
    %v400 = vld [vmem:[%s5 + $0x10c] sm:$0xff]
    %v401 = vld [vmem:[%s5 + $0x114] sm:$0xf]
    %v402 = vld [vmem:[%s5 + $0x118] sm:$0xff]
    %v403 = vld [vmem:[%s5 + $0x120] sm:$0xff]
    %v404 = vld [vmem:[%s5 + $0x128] sm:$0xff]
    %v405 = vld [vmem:[%s5 + $0x130] sm:$0xf]
    %v406 = vld [vmem:[%s5 + $0x134] sm:$0xff]
    %v407 = vld [vmem:[%s5 + $0x13c] sm:$0xff]
    %v408 = vld [vmem:[%s5 + $0x144] sm:$0xff]
    %v409 = vld [vmem:[%s5 + $0x14c] sm:$0xf]
    %v410 = vld [vmem:[%s5 + $0x150] sm:$0xff]
    %v411 = vld [vmem:[%s5 + $0x158] sm:$0xff]
    %v412 = vld [vmem:[%s5 + $0x160] sm:$0xff]
    %v413 = vld [vmem:[%s5 + $0x168] sm:$0xf]
    %v414 = vld [vmem:[%s5 + $0x16c] sm:$0xff]
    %v415 = vld [vmem:[%s5 + $0x174] sm:$0xff]
    %v416 = vld [vmem:[%s5 + $0x17c] sm:$0xff]
    %v417 = vld [vmem:[%s5 + $0x184] sm:$0xf]
    %v418 = vld [vmem:[%s5 + $0x188] sm:$0xff]
    %v419 = vld [vmem:[%s5 + $0x190] sm:$0xff]
    %v420 = vld [vmem:[%s5 + $0x198] sm:$0xff]
    %v421 = vld [vmem:[%s5 + $0x1a0] sm:$0xf]
    %v422 = vld [vmem:[%s5 + $0x1a4] sm:$0xff]
    %v423 = vld [vmem:[%s5 + $0x1ac] sm:$0xff]
    %v424 = vld [vmem:[%s5 + $0x1b4] sm:$0xff]
    %v425 = vld [vmem:[%s5 + $0x1bc] sm:$0xf]
    %v426 = vld [vmem:[%s5 + $0x1c0] sm:$0xff]
    %v427 = vld [vmem:[%s5 + $0x1c8] sm:$0xff]
    %v428 = vld [vmem:[%s5 + $0x1d0] sm:$0xff]
    %v429 = vld [vmem:[%s5 + $0x1d8] sm:$0xf]
    %v430 = vld [vmem:[%s5 + $0x1dc] sm:$0xff]
    %v431 = vld [vmem:[%s5 + $0x1e4] sm:$0xff]
    %v432 = vld [vmem:[%s5 + $0x1ec] sm:$0xff]
    %v433 = vld [vmem:[%s5 + $0x1f4] sm:$0xf]
    %v434 = vld [vmem:[%s5 + $0x1f8] sm:$0xff]
    %v435 = vld [vmem:[%s5 + $0x200] sm:$0xff]
    %v436 = vld [vmem:[%s5 + $0x208] sm:$0xff]
    %v437 = vld [vmem:[%s5 + $0x210] sm:$0xf]
    %v438 = vld [vmem:[%s5 + $0x214] sm:$0xff]
    %v439 = vld [vmem:[%s5 + $0x21c] sm:$0xff]
    %v440 = vld [vmem:[%s5 + $0x224] sm:$0xff]
    %v441 = vld [vmem:[%s5 + $0x22c] sm:$0xf]
    %v442 = vld [vmem:[%s5 + $0x230] sm:$0xff]
    %v443 = vld [vmem:[%s5 + $0x238] sm:$0xff]
    %v444 = vld [vmem:[%s5 + $0x240] sm:$0xff]
    %v445 = vld [vmem:[%s5 + $0x248] sm:$0xf]
    %v446 = vld [vmem:[%s5 + $0x24c] sm:$0xff]
    %v447 = vld [vmem:[%s5 + $0x254] sm:$0xff]
    %v448 = vld [vmem:[%s5 + $0x25c] sm:$0xff]
    %v449 = vld [vmem:[%s5 + $0x264] sm:$0xf]
    %v450 = vld [vmem:[%s5 + $0x268] sm:$0xff]
    %v451 = vld [vmem:[%s5 + $0x270] sm:$0xff]
    %v452 = vld [vmem:[%s5 + $0x278] sm:$0xff]
    %v453 = vld [vmem:[%s5 + $0x280] sm:$0xf]
    %v454 = vld [vmem:[%s5 + $0x284] sm:$0xff]
    %v455 = vld [vmem:[%s5 + $0x28c] sm:$0xff]
    %v456 = vld [vmem:[%s5 + $0x294] sm:$0xff]
    %v457 = vld [vmem:[%s5 + $0x29c] sm:$0xf]
    %v458 = vld [vmem:[%s5 + $0x2a0] sm:$0xff]
    %v459 = vld [vmem:[%s5 + $0x2a8] sm:$0xff]
    %v460 = vld [vmem:[%s5 + $0x2b0] sm:$0xff]
    %v461 = vld [vmem:[%s5 + $0x2b8] sm:$0xf]
    %v462 = vld [vmem:[%s5 + $0x2bc] sm:$0xff]
    %v463 = vld [vmem:[%s5 + $0x2c4] sm:$0xff]
    %v464 = vld [vmem:[%s5 + $0x2cc] sm:$0xff]
    %v465 = vld [vmem:[%s5 + $0x2d4] sm:$0xf]
    %v466 = vld [vmem:[%s5 + $0x2d8] sm:$0xff]
    %v467 = vld [vmem:[%s5 + $0x2e0] sm:$0xff]
    %v468 = vld [vmem:[%s5 + $0x2e8] sm:$0xff]
    %v469 = vld [vmem:[%s5 + $0x2f0] sm:$0xf]
    %v470 = vld [vmem:[%s5 + $0x2f4] sm:$0xff]
    %v471 = vld [vmem:[%s5 + $0x2fc] sm:$0xff]
    %v472 = vld [vmem:[%s5 + $0x304] sm:$0xff]
    %v473 = vld [vmem:[%s5 + $0x30c] sm:$0xf]
    %v474 = vld [vmem:[%s5 + $0x310] sm:$0xff]
    %v475 = vld [vmem:[%s5 + $0x318] sm:$0xff]
    %v476 = vld [vmem:[%s5 + $0x320] sm:$0xff]
    %v477 = vld [vmem:[%s5 + $0x328] sm:$0xf]
    %v478 = vld [vmem:[%s5 + $0x32c] sm:$0xff]
    %v479 = vld [vmem:[%s5 + $0x334] sm:$0xff]
    %v480 = vld [vmem:[%s5 + $0x33c] sm:$0xff]
    %v481 = vld [vmem:[%s5 + $0x344] sm:$0xf]
    %v482 = vld [vmem:[%s5 + $0x348] sm:$0xff]
    %v483 = vld [vmem:[%s5 + $0x350] sm:$0xff]
    %v484 = vld [vmem:[%s5 + $0x358] sm:$0xff]
    %v485 = vld [vmem:[%s5 + $0x360] sm:$0xf]
    %v486 = vld [vmem:[%s5 + $0x364] sm:$0xff]
    %v487 = vld [vmem:[%s5 + $0x36c] sm:$0xff]
    %v488 = vld [vmem:[%s5 + $0x374] sm:$0xff]
    %v489 = vld [vmem:[%s5 + $0x37c] sm:$0xf]
    %v490 = vld [vmem:[%s5 + $0x380] sm:$0xff]
    %v491 = vld [vmem:[%s5 + $0x388] sm:$0xff]
    %v492 = vld [vmem:[%s5 + $0x390] sm:$0xff]
    %v493 = vld [vmem:[%s5 + $0x398] sm:$0xf]
    %v494 = vld [vmem:[%s5 + $0x39c] sm:$0xff]
    %v495 = vld [vmem:[%s5 + $0x3a4] sm:$0xff]
    %v496 = vld [vmem:[%s5 + $0x3ac] sm:$0xff]
    %v497 = vld [vmem:[%s5 + $0x3b4] sm:$0xf]
    %v498 = vld [vmem:[%s5 + $0x3b8] sm:$0xff]
    %v499 = vld [vmem:[%s5 + $0x3c0] sm:$0xff]
    %v500 = vld [vmem:[%s5 + $0x3c8] sm:$0xff]
    %v501 = vld [vmem:[%s5 + $0x3d0] sm:$0xf]
    %v502 = vld [vmem:[%s5 + $0x3d4] sm:$0xff]
    %v503 = vld [vmem:[%s5 + $0x3dc] sm:$0xff]
    %v504 = vld [vmem:[%s5 + $0x3e4] sm:$0xff]
    %v505 = vld [vmem:[%s5 + $0x3ec] sm:$0xf]
    %v506 = vld [vmem:[%s5 + $0x3f0] sm:$0xff]
    %v507 = vld [vmem:[%s5 + $0x3f8] sm:$0xff]
    %v508 = vld [vmem:[%s5 + $0x400] sm:$0xff]
    %v509 = vld [vmem:[%s5 + $0x408] sm:$0xf]
    %v510 = vld [vmem:[%s5 + $0x40c] sm:$0xff]
    %v511 = vld [vmem:[%s5 + $0x414] sm:$0xff]
    %v512 = vld [vmem:[%s5 + $0x41c] sm:$0xff]
    %v513 = vld [vmem:[%s5 + $0x424] sm:$0xf]
    %v514 = vld [vmem:[%s5 + $0x428] sm:$0xff]
    %v515 = vld [vmem:[%s5 + $0x430] sm:$0xff]
    %v516 = vld [vmem:[%s5 + $0x438] sm:$0xff]
    %v517 = vld [vmem:[%s5 + $0x440] sm:$0xf]
    %v518 = vld [vmem:[%s5 + $0x444] sm:$0xff]
    %v519 = vld [vmem:[%s5 + $0x44c] sm:$0xff]
    %v520 = vld [vmem:[%s5 + $0x454] sm:$0xff]
    %v521 = vld [vmem:[%s5 + $0x45c] sm:$0xf]
    %v522 = vld [vmem:[%s5 + $0x460] sm:$0xff]
    %v523 = vld [vmem:[%s5 + $0x468] sm:$0xff]
    %v524 = vld [vmem:[%s5 + $0x470] sm:$0xff]
    %v525 = vld [vmem:[%s5 + $0x478] sm:$0xf]
    %v526 = vld [vmem:[%s5 + $0x47c] sm:$0xff]
    %v527 = vld [vmem:[%s5 + $0x484] sm:$0xff]
    %v528 = vld [vmem:[%s5 + $0x48c] sm:$0xff]
    %v529 = vld [vmem:[%s5 + $0x494] sm:$0xf]
    %v530 = vld [vmem:[%s5 + $0x498] sm:$0xff]
    %v531 = vld [vmem:[%s5 + $0x4a0] sm:$0xff]
    %v532 = vld [vmem:[%s5 + $0x4a8] sm:$0xff]
    %v533 = vld [vmem:[%s5 + $0x4b0] sm:$0xf]
    %v534 = vld [vmem:[%s5 + $0x4b4] sm:$0xff]
    %v535 = vld [vmem:[%s5 + $0x4bc] sm:$0xff]
    %v536 = vld [vmem:[%s5 + $0x4c4] sm:$0xff]
    %v537 = vld [vmem:[%s5 + $0x4cc] sm:$0xf]
    %v538 = vld [vmem:[%s5 + $0x4d0] sm:$0xff]
    %v539 = vld [vmem:[%s5 + $0x4d8] sm:$0xff]
    %v540 = vld [vmem:[%s5 + $0x4e0] sm:$0xff]
    %v541 = vld [vmem:[%s5 + $0x4e8] sm:$0xf]
    %v542 = vld [vmem:[%s5 + $0x4ec] sm:$0xff]
    %v543 = vld [vmem:[%s5 + $0x4f4] sm:$0xff]
    %v544 = vld [vmem:[%s5 + $0x4fc] sm:$0xff]
    %v545 = vld [vmem:[%s5 + $0x504] sm:$0xf]
    %v546 = vld [vmem:[%s5 + $0x508] sm:$0xff]
    %v547 = vld [vmem:[%s5 + $0x510] sm:$0xff]
    %v548 = vld [vmem:[%s5 + $0x518] sm:$0xff]
    %v549 = vld [vmem:[%s5 + $0x520] sm:$0xf]
    %v550 = vld [vmem:[%s5 + $0x524] sm:$0xff]
    %v551 = vld [vmem:[%s5 + $0x52c] sm:$0xff]
    %v552 = vld [vmem:[%s5 + $0x534] sm:$0xff]
    %v553 = vld [vmem:[%s5 + $0x53c] sm:$0xf]
    %v554 = vld [vmem:[%s6] sm:$0x7f]
    %v556 = vlaneseq
    %v557 = vshrl.u32 %v556, 7
    %v558 = vsub.s32 0, %v557
    %v559 = vrot.slane %v554, %v558
    %v560 = vlaneseq
    %v561 = vshrl.u32 %v560, 7
    %v562 = vsub.s32 1, %v561
    %v563 = vrot.slane %v554, %v562
    %v564 = vlaneseq
    %v565 = vshrl.u32 %v564, 7
    %v566 = vsub.s32 2, %v565
    %v567 = vrot.slane %v554, %v566
    %v568 = vlaneseq
    %v569 = vshrl.u32 %v568, 7
    %v570 = vsub.s32 3, %v569
    %v571 = vrot.slane %v554, %v570
    %v572 = vlaneseq
    %v573 = vshrl.u32 %v572, 7
    %v574 = vsub.s32 4, %v573
    %v575 = vrot.slane %v554, %v574
    %v576 = vlaneseq
    %v577 = vshrl.u32 %v576, 7
    %v578 = vsub.s32 5, %v577
    %v579 = vrot.slane %v554, %v578
    %v580 = vlaneseq
    %v581 = vshrl.u32 %v580, 7
    %v582 = vsub.s32 6, %v581
    %v583 = vrot.slane %v554, %v582
    %v783 = vunpack.c.l.b16 %v362
    %v784 = vunpack.c.h.b16 %v362
    %v785 = vunpack.c.l.b16 %v363
    %v786 = vunpack.c.h.b16 %v363
    %v787 = vunpack.c.l.b16 %v364
    %v788 = vunpack.c.h.b16 %v364
    %v789 = vunpack.c.l.b16 %v365
    %v790 = vunpack.c.l.b16 %v366
    %v791 = vunpack.c.h.b16 %v366
    %v792 = vunpack.c.l.b16 %v367
    %v793 = vunpack.c.h.b16 %v367
    %v794 = vunpack.c.l.b16 %v368
    %v795 = vunpack.c.h.b16 %v368
    %v796 = vunpack.c.l.b16 %v369
    %v797 = vunpack.c.l.b16 %v370
    %v798 = vunpack.c.h.b16 %v370
    %v799 = vunpack.c.l.b16 %v371
    %v800 = vunpack.c.h.b16 %v371
    %v801 = vunpack.c.l.b16 %v372
    %v802 = vunpack.c.h.b16 %v372
    %v803 = vunpack.c.l.b16 %v373
    %v804 = vunpack.c.l.b16 %v374
    %v805 = vunpack.c.h.b16 %v374
    %v806 = vunpack.c.l.b16 %v375
    %v807 = vunpack.c.h.b16 %v375
    %v808 = vunpack.c.l.b16 %v376
    %v809 = vunpack.c.h.b16 %v376
    %v810 = vunpack.c.l.b16 %v377
    %v811 = vunpack.c.l.b16 %v378
    %v812 = vunpack.c.h.b16 %v378
    %v813 = vunpack.c.l.b16 %v379
    %v814 = vunpack.c.h.b16 %v379
    %v815 = vunpack.c.l.b16 %v380
    %v816 = vunpack.c.h.b16 %v380
    %v817 = vunpack.c.l.b16 %v381
    %v818 = vunpack.c.l.b16 %v382
    %v819 = vunpack.c.h.b16 %v382
    %v820 = vunpack.c.l.b16 %v383
    %v821 = vunpack.c.h.b16 %v383
    %v822 = vunpack.c.l.b16 %v384
    %v823 = vunpack.c.h.b16 %v384
    %v824 = vunpack.c.l.b16 %v385
    %v825 = vunpack.c.l.b16 %v386
    %v826 = vunpack.c.h.b16 %v386
    %v827 = vunpack.c.l.b16 %v387
    %v828 = vunpack.c.h.b16 %v387
    %v829 = vunpack.c.l.b16 %v388
    %v830 = vunpack.c.h.b16 %v388
    %v831 = vunpack.c.l.b16 %v389
    %v832 = vunpack.c.l.b16 %v390
    %v833 = vunpack.c.h.b16 %v390
    %v834 = vunpack.c.l.b16 %v391
    %v835 = vunpack.c.h.b16 %v391
    %v836 = vunpack.c.l.b16 %v392
    %v837 = vunpack.c.h.b16 %v392
    %v838 = vunpack.c.l.b16 %v393
    %v839 = vunpack.c.l.b16 %v394
    %v840 = vunpack.c.h.b16 %v394
    %v841 = vunpack.c.l.b16 %v395
    %v842 = vunpack.c.h.b16 %v395
    %v843 = vunpack.c.l.b16 %v396
    %v844 = vunpack.c.h.b16 %v396
    %v845 = vunpack.c.l.b16 %v397
    %v846 = vunpack.c.l.b16 %v398
    %v847 = vunpack.c.h.b16 %v398
    %v848 = vunpack.c.l.b16 %v399
    %v849 = vunpack.c.h.b16 %v399
    %v850 = vunpack.c.l.b16 %v400
    %v851 = vunpack.c.h.b16 %v400
    %v852 = vunpack.c.l.b16 %v401
    %v853 = vunpack.c.l.b16 %v402
    %v854 = vunpack.c.h.b16 %v402
    %v855 = vunpack.c.l.b16 %v403
    %v856 = vunpack.c.h.b16 %v403
    %v857 = vunpack.c.l.b16 %v404
    %v858 = vunpack.c.h.b16 %v404
    %v859 = vunpack.c.l.b16 %v405
    %v860 = vunpack.c.l.b16 %v406
    %v861 = vunpack.c.h.b16 %v406
    %v862 = vunpack.c.l.b16 %v407
    %v863 = vunpack.c.h.b16 %v407
    %v864 = vunpack.c.l.b16 %v408
    %v865 = vunpack.c.h.b16 %v408
    %v866 = vunpack.c.l.b16 %v409
    %v867 = vunpack.c.l.b16 %v410
    %v868 = vunpack.c.h.b16 %v410
    %v869 = vunpack.c.l.b16 %v411
    %v870 = vunpack.c.h.b16 %v411
    %v871 = vunpack.c.l.b16 %v412
    %v872 = vunpack.c.h.b16 %v412
    %v873 = vunpack.c.l.b16 %v413
    %v874 = vunpack.c.l.b16 %v414
    %v875 = vunpack.c.h.b16 %v414
    %v876 = vunpack.c.l.b16 %v415
    %v877 = vunpack.c.h.b16 %v415
    %v878 = vunpack.c.l.b16 %v416
    %v879 = vunpack.c.h.b16 %v416
    %v880 = vunpack.c.l.b16 %v417
    %v881 = vunpack.c.l.b16 %v418
    %v882 = vunpack.c.h.b16 %v418
    %v883 = vunpack.c.l.b16 %v419
    %v884 = vunpack.c.h.b16 %v419
    %v885 = vunpack.c.l.b16 %v420
    %v886 = vunpack.c.h.b16 %v420
    %v887 = vunpack.c.l.b16 %v421
    %v888 = vunpack.c.l.b16 %v422
    %v889 = vunpack.c.h.b16 %v422
    %v890 = vunpack.c.l.b16 %v423
    %v891 = vunpack.c.h.b16 %v423
    %v892 = vunpack.c.l.b16 %v424
    %v893 = vunpack.c.h.b16 %v424
    %v894 = vunpack.c.l.b16 %v425
    %v895 = vunpack.c.l.b16 %v426
    %v896 = vunpack.c.h.b16 %v426
    %v897 = vunpack.c.l.b16 %v427
    %v898 = vunpack.c.h.b16 %v427
    %v899 = vunpack.c.l.b16 %v428
    %v900 = vunpack.c.h.b16 %v428
    %v901 = vunpack.c.l.b16 %v429
    %v902 = vunpack.c.l.b16 %v430
    %v903 = vunpack.c.h.b16 %v430
    %v904 = vunpack.c.l.b16 %v431
    %v905 = vunpack.c.h.b16 %v431
    %v906 = vunpack.c.l.b16 %v432
    %v907 = vunpack.c.h.b16 %v432
    %v908 = vunpack.c.l.b16 %v433
    %v909 = vunpack.c.l.b16 %v434
    %v910 = vunpack.c.h.b16 %v434
    %v911 = vunpack.c.l.b16 %v435
    %v912 = vunpack.c.h.b16 %v435
    %v913 = vunpack.c.l.b16 %v436
    %v914 = vunpack.c.h.b16 %v436
    %v915 = vunpack.c.l.b16 %v437
    %v916 = vunpack.c.l.b16 %v438
    %v917 = vunpack.c.h.b16 %v438
    %v918 = vunpack.c.l.b16 %v439
    %v919 = vunpack.c.h.b16 %v439
    %v920 = vunpack.c.l.b16 %v440
    %v921 = vunpack.c.h.b16 %v440
    %v922 = vunpack.c.l.b16 %v441
    %v923 = vunpack.c.l.b16 %v442
    %v924 = vunpack.c.h.b16 %v442
    %v925 = vunpack.c.l.b16 %v443
    %v926 = vunpack.c.h.b16 %v443
    %v927 = vunpack.c.l.b16 %v444
    %v928 = vunpack.c.h.b16 %v444
    %v929 = vunpack.c.l.b16 %v445
    %v930 = vunpack.c.l.b16 %v446
    %v931 = vunpack.c.h.b16 %v446
    %v932 = vunpack.c.l.b16 %v447
    %v933 = vunpack.c.h.b16 %v447
    %v934 = vunpack.c.l.b16 %v448
    %v935 = vunpack.c.h.b16 %v448
    %v936 = vunpack.c.l.b16 %v449
    %v937 = vunpack.c.l.b16 %v450
    %v938 = vunpack.c.h.b16 %v450
    %v939 = vunpack.c.l.b16 %v451
    %v940 = vunpack.c.h.b16 %v451
    %v941 = vunpack.c.l.b16 %v452
    %v942 = vunpack.c.h.b16 %v452
    %v943 = vunpack.c.l.b16 %v453
    %v944 = vunpack.c.l.b16 %v454
    %v945 = vunpack.c.h.b16 %v454
    %v946 = vunpack.c.l.b16 %v455
    %v947 = vunpack.c.h.b16 %v455
    %v948 = vunpack.c.l.b16 %v456
    %v949 = vunpack.c.h.b16 %v456
    %v950 = vunpack.c.l.b16 %v457
    %v951 = vunpack.c.l.b16 %v458
    %v952 = vunpack.c.h.b16 %v458
    %v953 = vunpack.c.l.b16 %v459
    %v954 = vunpack.c.h.b16 %v459
    %v955 = vunpack.c.l.b16 %v460
    %v956 = vunpack.c.h.b16 %v460
    %v957 = vunpack.c.l.b16 %v461
    %v958 = vunpack.c.l.b16 %v462
    %v959 = vunpack.c.h.b16 %v462
    %v960 = vunpack.c.l.b16 %v463
    %v961 = vunpack.c.h.b16 %v463
    %v962 = vunpack.c.l.b16 %v464
    %v963 = vunpack.c.h.b16 %v464
    %v964 = vunpack.c.l.b16 %v465
    %v965 = vunpack.c.l.b16 %v466
    %v966 = vunpack.c.h.b16 %v466
    %v967 = vunpack.c.l.b16 %v467
    %v968 = vunpack.c.h.b16 %v467
    %v969 = vunpack.c.l.b16 %v468
    %v970 = vunpack.c.h.b16 %v468
    %v971 = vunpack.c.l.b16 %v469
    %v972 = vunpack.c.l.b16 %v470
    %v973 = vunpack.c.h.b16 %v470
    %v974 = vunpack.c.l.b16 %v471
    %v975 = vunpack.c.h.b16 %v471
    %v976 = vunpack.c.l.b16 %v472
    %v977 = vunpack.c.h.b16 %v472
    %v978 = vunpack.c.l.b16 %v473
    %v979 = vunpack.c.l.b16 %v474
    %v980 = vunpack.c.h.b16 %v474
    %v981 = vunpack.c.l.b16 %v475
    %v982 = vunpack.c.h.b16 %v475
    %v983 = vunpack.c.l.b16 %v476
    %v984 = vunpack.c.h.b16 %v476
    %v985 = vunpack.c.l.b16 %v477
    %v986 = vunpack.c.l.b16 %v478
    %v987 = vunpack.c.h.b16 %v478
    %v988 = vunpack.c.l.b16 %v479
    %v989 = vunpack.c.h.b16 %v479
    %v990 = vunpack.c.l.b16 %v480
    %v991 = vunpack.c.h.b16 %v480
    %v992 = vunpack.c.l.b16 %v481
    %v993 = vunpack.c.l.b16 %v482
    %v994 = vunpack.c.h.b16 %v482
    %v995 = vunpack.c.l.b16 %v483
    %v996 = vunpack.c.h.b16 %v483
    %v997 = vunpack.c.l.b16 %v484
    %v998 = vunpack.c.h.b16 %v484
    %v999 = vunpack.c.l.b16 %v485
    %v1000 = vunpack.c.l.b16 %v486
    %v1001 = vunpack.c.h.b16 %v486
    %v1002 = vunpack.c.l.b16 %v487
    %v1003 = vunpack.c.h.b16 %v487
    %v1004 = vunpack.c.l.b16 %v488
    %v1005 = vunpack.c.h.b16 %v488
    %v1006 = vunpack.c.l.b16 %v489
    %v1007 = vunpack.c.l.b16 %v490
    %v1008 = vunpack.c.h.b16 %v490
    %v1009 = vunpack.c.l.b16 %v491
    %v1010 = vunpack.c.h.b16 %v491
    %v1011 = vunpack.c.l.b16 %v492
    %v1012 = vunpack.c.h.b16 %v492
    %v1013 = vunpack.c.l.b16 %v493
    %v1014 = vunpack.c.l.b16 %v494
    %v1015 = vunpack.c.h.b16 %v494
    %v1016 = vunpack.c.l.b16 %v495
    %v1017 = vunpack.c.h.b16 %v495
    %v1018 = vunpack.c.l.b16 %v496
    %v1019 = vunpack.c.h.b16 %v496
    %v1020 = vunpack.c.l.b16 %v497
    %v1021 = vunpack.c.l.b16 %v498
    %v1022 = vunpack.c.h.b16 %v498
    %v1023 = vunpack.c.l.b16 %v499
    %v1024 = vunpack.c.h.b16 %v499
    %v1025 = vunpack.c.l.b16 %v500
    %v1026 = vunpack.c.h.b16 %v500
    %v1027 = vunpack.c.l.b16 %v501
    %v1028 = vunpack.c.l.b16 %v502
    %v1029 = vunpack.c.h.b16 %v502
    %v1030 = vunpack.c.l.b16 %v503
    %v1031 = vunpack.c.h.b16 %v503
    %v1032 = vunpack.c.l.b16 %v504
    %v1033 = vunpack.c.h.b16 %v504
    %v1034 = vunpack.c.l.b16 %v505
    %v1035 = vunpack.c.l.b16 %v506
    %v1036 = vunpack.c.h.b16 %v506
    %v1037 = vunpack.c.l.b16 %v507
    %v1038 = vunpack.c.h.b16 %v507
    %v1039 = vunpack.c.l.b16 %v508
    %v1040 = vunpack.c.h.b16 %v508
    %v1041 = vunpack.c.l.b16 %v509
    %v1042 = vunpack.c.l.b16 %v510
    %v1043 = vunpack.c.h.b16 %v510
    %v1044 = vunpack.c.l.b16 %v511
    %v1045 = vunpack.c.h.b16 %v511
    %v1046 = vunpack.c.l.b16 %v512
    %v1047 = vunpack.c.h.b16 %v512
    %v1048 = vunpack.c.l.b16 %v513
    %v1049 = vunpack.c.l.b16 %v514
    %v1050 = vunpack.c.h.b16 %v514
    %v1051 = vunpack.c.l.b16 %v515
    %v1052 = vunpack.c.h.b16 %v515
    %v1053 = vunpack.c.l.b16 %v516
    %v1054 = vunpack.c.h.b16 %v516
    %v1055 = vunpack.c.l.b16 %v517
    %v1056 = vunpack.c.l.b16 %v518
    %v1057 = vunpack.c.h.b16 %v518
    %v1058 = vunpack.c.l.b16 %v519
    %v1059 = vunpack.c.h.b16 %v519
    %v1060 = vunpack.c.l.b16 %v520
    %v1061 = vunpack.c.h.b16 %v520
    %v1062 = vunpack.c.l.b16 %v521
    %v1063 = vunpack.c.l.b16 %v522
    %v1064 = vunpack.c.h.b16 %v522
    %v1065 = vunpack.c.l.b16 %v523
    %v1066 = vunpack.c.h.b16 %v523
    %v1067 = vunpack.c.l.b16 %v524
    %v1068 = vunpack.c.h.b16 %v524
    %v1069 = vunpack.c.l.b16 %v525
    %v1070 = vunpack.c.l.b16 %v526
    %v1071 = vunpack.c.h.b16 %v526
    %v1072 = vunpack.c.l.b16 %v527
    %v1073 = vunpack.c.h.b16 %v527
    %v1074 = vunpack.c.l.b16 %v528
    %v1075 = vunpack.c.h.b16 %v528
    %v1076 = vunpack.c.l.b16 %v529
    %v1077 = vunpack.c.l.b16 %v530
    %v1078 = vunpack.c.h.b16 %v530
    %v1079 = vunpack.c.l.b16 %v531
    %v1080 = vunpack.c.h.b16 %v531
    %v1081 = vunpack.c.l.b16 %v532
    %v1082 = vunpack.c.h.b16 %v532
    %v1083 = vunpack.c.l.b16 %v533
    %v1084 = vunpack.c.l.b16 %v534
    %v1085 = vunpack.c.h.b16 %v534
    %v1086 = vunpack.c.l.b16 %v535
    %v1087 = vunpack.c.h.b16 %v535
    %v1088 = vunpack.c.l.b16 %v536
    %v1089 = vunpack.c.h.b16 %v536
    %v1090 = vunpack.c.l.b16 %v537
    %v1091 = vunpack.c.l.b16 %v538
    %v1092 = vunpack.c.h.b16 %v538
    %v1093 = vunpack.c.l.b16 %v539
    %v1094 = vunpack.c.h.b16 %v539
    %v1095 = vunpack.c.l.b16 %v540
    %v1096 = vunpack.c.h.b16 %v540
    %v1097 = vunpack.c.l.b16 %v541
    %v1098 = vunpack.c.l.b16 %v542
    %v1099 = vunpack.c.h.b16 %v542
    %v1100 = vunpack.c.l.b16 %v543
    %v1101 = vunpack.c.h.b16 %v543
    %v1102 = vunpack.c.l.b16 %v544
    %v1103 = vunpack.c.h.b16 %v544
    %v1104 = vunpack.c.l.b16 %v545
    %v1105 = vunpack.c.l.b16 %v546
    %v1106 = vunpack.c.h.b16 %v546
    %v1107 = vunpack.c.l.b16 %v547
    %v1108 = vunpack.c.h.b16 %v547
    %v1109 = vunpack.c.l.b16 %v548
    %v1110 = vunpack.c.h.b16 %v548
    %v1111 = vunpack.c.l.b16 %v549
    %v1112 = vunpack.c.l.b16 %v550
    %v1113 = vunpack.c.h.b16 %v550
    %v1114 = vunpack.c.l.b16 %v551
    %v1115 = vunpack.c.h.b16 %v551
    %v1116 = vunpack.c.l.b16 %v552
    %v1117 = vunpack.c.h.b16 %v552
    %v1118 = vunpack.c.l.b16 %v553
    %v1119 = vpack.c.b16 %v790, %v783
    %v1120 = vpack.c.b16 %v791, %v784
    %v1121 = vpack.c.b16 %v792, %v785
    %v1122 = vpack.c.b16 %v793, %v786
    %v1123 = vpack.c.b16 %v794, %v787
    %v1124 = vpack.c.b16 %v795, %v788
    %v1125 = vpack.c.b16 %v796, %v789
    %v1126 = vpack.c.b16 %v804, %v797
    %v1127 = vpack.c.b16 %v805, %v798
    %v1128 = vpack.c.b16 %v806, %v799
    %v1129 = vpack.c.b16 %v807, %v800
    %v1130 = vpack.c.b16 %v808, %v801
    %v1131 = vpack.c.b16 %v809, %v802
    %v1132 = vpack.c.b16 %v810, %v803
    %v1133 = vpack.c.b16 %v818, %v811
    %v1134 = vpack.c.b16 %v819, %v812
    %v1135 = vpack.c.b16 %v820, %v813
    %v1136 = vpack.c.b16 %v821, %v814
    %v1137 = vpack.c.b16 %v822, %v815
    %v1138 = vpack.c.b16 %v823, %v816
    %v1139 = vpack.c.b16 %v824, %v817
    %v1140 = vpack.c.b16 %v832, %v825
    %v1141 = vpack.c.b16 %v833, %v826
    %v1142 = vpack.c.b16 %v834, %v827
    %v1143 = vpack.c.b16 %v835, %v828
    %v1144 = vpack.c.b16 %v836, %v829
    %v1145 = vpack.c.b16 %v837, %v830
    %v1146 = vpack.c.b16 %v838, %v831
    %v1147 = vpack.c.b16 %v846, %v839
    %v1148 = vpack.c.b16 %v847, %v840
    %v1149 = vpack.c.b16 %v848, %v841
    %v1150 = vpack.c.b16 %v849, %v842
    %v1151 = vpack.c.b16 %v850, %v843
    %v1152 = vpack.c.b16 %v851, %v844
    %v1153 = vpack.c.b16 %v852, %v845
    %v1154 = vpack.c.b16 %v860, %v853
    %v1155 = vpack.c.b16 %v861, %v854
    %v1156 = vpack.c.b16 %v862, %v855
    %v1157 = vpack.c.b16 %v863, %v856
    %v1158 = vpack.c.b16 %v864, %v857
    %v1159 = vpack.c.b16 %v865, %v858
    %v1160 = vpack.c.b16 %v866, %v859
    %v1161 = vpack.c.b16 %v874, %v867
    %v1162 = vpack.c.b16 %v875, %v868
    %v1163 = vpack.c.b16 %v876, %v869
    %v1164 = vpack.c.b16 %v877, %v870
    %v1165 = vpack.c.b16 %v878, %v871
    %v1166 = vpack.c.b16 %v879, %v872
    %v1167 = vpack.c.b16 %v880, %v873
    %v1168 = vpack.c.b16 %v888, %v881
    %v1169 = vpack.c.b16 %v889, %v882
    %v1170 = vpack.c.b16 %v890, %v883
    %v1171 = vpack.c.b16 %v891, %v884
    %v1172 = vpack.c.b16 %v892, %v885
    %v1173 = vpack.c.b16 %v893, %v886
    %v1174 = vpack.c.b16 %v894, %v887
    %v1175 = vpack.c.b16 %v902, %v895
    %v1176 = vpack.c.b16 %v903, %v896
    %v1177 = vpack.c.b16 %v904, %v897
    %v1178 = vpack.c.b16 %v905, %v898
    %v1179 = vpack.c.b16 %v906, %v899
    %v1180 = vpack.c.b16 %v907, %v900
    %v1181 = vpack.c.b16 %v908, %v901
    %v1182 = vpack.c.b16 %v916, %v909
    %v1183 = vpack.c.b16 %v917, %v910
    %v1184 = vpack.c.b16 %v918, %v911
    %v1185 = vpack.c.b16 %v919, %v912
    %v1186 = vpack.c.b16 %v920, %v913
    %v1187 = vpack.c.b16 %v921, %v914
    %v1188 = vpack.c.b16 %v922, %v915
    %v1189 = vpack.c.b16 %v930, %v923
    %v1190 = vpack.c.b16 %v931, %v924
    %v1191 = vpack.c.b16 %v932, %v925
    %v1192 = vpack.c.b16 %v933, %v926
    %v1193 = vpack.c.b16 %v934, %v927
    %v1194 = vpack.c.b16 %v935, %v928
    %v1195 = vpack.c.b16 %v936, %v929
    %v1196 = vpack.c.b16 %v944, %v937
    %v1197 = vpack.c.b16 %v945, %v938
    %v1198 = vpack.c.b16 %v946, %v939
    %v1199 = vpack.c.b16 %v947, %v940
    %v1200 = vpack.c.b16 %v948, %v941
    %v1201 = vpack.c.b16 %v949, %v942
    %v1202 = vpack.c.b16 %v950, %v943
    %v1203 = vpack.c.b16 %v958, %v951
    %v1204 = vpack.c.b16 %v959, %v952
    %v1205 = vpack.c.b16 %v960, %v953
    %v1206 = vpack.c.b16 %v961, %v954
    %v1207 = vpack.c.b16 %v962, %v955
    %v1208 = vpack.c.b16 %v963, %v956
    %v1209 = vpack.c.b16 %v964, %v957
    %v1210 = vpack.c.b16 %v972, %v965
    %v1211 = vpack.c.b16 %v973, %v966
    %v1212 = vpack.c.b16 %v974, %v967
    %v1213 = vpack.c.b16 %v975, %v968
    %v1214 = vpack.c.b16 %v976, %v969
    %v1215 = vpack.c.b16 %v977, %v970
    %v1216 = vpack.c.b16 %v978, %v971
    %v1217 = vpack.c.b16 %v986, %v979
    %v1218 = vpack.c.b16 %v987, %v980
    %v1219 = vpack.c.b16 %v988, %v981
    %v1220 = vpack.c.b16 %v989, %v982
    %v1221 = vpack.c.b16 %v990, %v983
    %v1222 = vpack.c.b16 %v991, %v984
    %v1223 = vpack.c.b16 %v992, %v985
    %v1224 = vpack.c.b16 %v1000, %v993
    %v1225 = vpack.c.b16 %v1001, %v994
    %v1226 = vpack.c.b16 %v1002, %v995
    %v1227 = vpack.c.b16 %v1003, %v996
    %v1228 = vpack.c.b16 %v1004, %v997
    %v1229 = vpack.c.b16 %v1005, %v998
    %v1230 = vpack.c.b16 %v1006, %v999
    %v1231 = vpack.c.b16 %v1014, %v1007
    %v1232 = vpack.c.b16 %v1015, %v1008
    %v1233 = vpack.c.b16 %v1016, %v1009
    %v1234 = vpack.c.b16 %v1017, %v1010
    %v1235 = vpack.c.b16 %v1018, %v1011
    %v1236 = vpack.c.b16 %v1019, %v1012
    %v1237 = vpack.c.b16 %v1020, %v1013
    %v1238 = vpack.c.b16 %v1028, %v1021
    %v1239 = vpack.c.b16 %v1029, %v1022
    %v1240 = vpack.c.b16 %v1030, %v1023
    %v1241 = vpack.c.b16 %v1031, %v1024
    %v1242 = vpack.c.b16 %v1032, %v1025
    %v1243 = vpack.c.b16 %v1033, %v1026
    %v1244 = vpack.c.b16 %v1034, %v1027
    %v1245 = vpack.c.b16 %v1042, %v1035
    %v1246 = vpack.c.b16 %v1043, %v1036
    %v1247 = vpack.c.b16 %v1044, %v1037
    %v1248 = vpack.c.b16 %v1045, %v1038
    %v1249 = vpack.c.b16 %v1046, %v1039
    %v1250 = vpack.c.b16 %v1047, %v1040
    %v1251 = vpack.c.b16 %v1048, %v1041
    %v1252 = vpack.c.b16 %v1056, %v1049
    %v1253 = vpack.c.b16 %v1057, %v1050
    %v1254 = vpack.c.b16 %v1058, %v1051
    %v1255 = vpack.c.b16 %v1059, %v1052
    %v1256 = vpack.c.b16 %v1060, %v1053
    %v1257 = vpack.c.b16 %v1061, %v1054
    %v1258 = vpack.c.b16 %v1062, %v1055
    %v1259 = vpack.c.b16 %v1070, %v1063
    %v1260 = vpack.c.b16 %v1071, %v1064
    %v1261 = vpack.c.b16 %v1072, %v1065
    %v1262 = vpack.c.b16 %v1073, %v1066
    %v1263 = vpack.c.b16 %v1074, %v1067
    %v1264 = vpack.c.b16 %v1075, %v1068
    %v1265 = vpack.c.b16 %v1076, %v1069
    %v1266 = vpack.c.b16 %v1084, %v1077
    %v1267 = vpack.c.b16 %v1085, %v1078
    %v1268 = vpack.c.b16 %v1086, %v1079
    %v1269 = vpack.c.b16 %v1087, %v1080
    %v1270 = vpack.c.b16 %v1088, %v1081
    %v1271 = vpack.c.b16 %v1089, %v1082
    %v1272 = vpack.c.b16 %v1090, %v1083
    %v1273 = vpack.c.b16 %v1098, %v1091
    %v1274 = vpack.c.b16 %v1099, %v1092
    %v1275 = vpack.c.b16 %v1100, %v1093
    %v1276 = vpack.c.b16 %v1101, %v1094
    %v1277 = vpack.c.b16 %v1102, %v1095
    %v1278 = vpack.c.b16 %v1103, %v1096
    %v1279 = vpack.c.b16 %v1104, %v1097
    %v1280 = vpack.c.b16 %v1112, %v1105
    %v1281 = vpack.c.b16 %v1113, %v1106
    %v1282 = vpack.c.b16 %v1114, %v1107
    %v1283 = vpack.c.b16 %v1115, %v1108
    %v1284 = vpack.c.b16 %v1116, %v1109
    %v1285 = vpack.c.b16 %v1117, %v1110
    %v1286 = vpack.c.b16 %v1118, %v1111
    %1455 = vmatprep.subr.bf16.mxu0 %v1120
    %1456 = vmatpush1.bf16.msra.mxu0 %v1119
    %1457 = vmatprep.subr.bf16.mxu0 %v1127
    %1458 = vmatpush1.bf16.msra.mxu0 %v1126
    %1459 = vmatprep.subr.bf16.mxu0 %v1134
    %1460 = vmatpush1.bf16.msra.mxu0 %v1133
    %1461 = vmatprep.subr.bf16.mxu0 %v1141
    %1462 = vmatpush1.bf16.msra.mxu0 %v1140
    %1463 = vmatprep.subr.bf16.mxu0 %v1148
    %1464 = vmatpush1.bf16.msra.mxu0 %v1147
    %1465 = vmatprep.subr.bf16.mxu0 %v1155
    %1466 = vmatpush1.bf16.msra.mxu0 %v1154
    %1467 = vmatprep.subr.bf16.mxu0 %v1162
    %1468 = vmatpush1.bf16.msra.mxu0 %v1161
    %1469 = vmatprep.subr.bf16.mxu0 %v1169
    %1470 = vmatpush1.bf16.msra.mxu0 %v1168
    %1471 = vmatprep.subr.bf16.mxu0 %v1176
    %1472 = vmatpush1.bf16.msra.mxu0 %v1175
    %1473 = vmatprep.subr.bf16.mxu0 %v1183
    %1474 = vmatpush1.bf16.msra.mxu0 %v1182
    %1475 = vmatprep.subr.bf16.mxu0 %v1190
    %1476 = vmatpush1.bf16.msra.mxu0 %v1189
    %1477 = vmatprep.subr.bf16.mxu0 %v1197
    %1478 = vmatpush1.bf16.msra.mxu0 %v1196
    %1479 = vmatprep.subr.bf16.mxu0 %v1204
    %1480 = vmatpush1.bf16.msra.mxu0 %v1203
    %1481 = vmatprep.subr.bf16.mxu0 %v1211
    %1482 = vmatpush1.bf16.msra.mxu0 %v1210
    %1483 = vmatprep.subr.bf16.mxu0 %v1218
    %1484 = vmatpush1.bf16.msra.mxu0 %v1217
    %1485 = vmatprep.subr.bf16.mxu0 %v1225
    %1486 = vmatpush1.bf16.msra.mxu0 %v1224
    %1487 = vmatprep.mubr.bf16.mxu0 %v360
    %1488 = vmatmul.mubr.bf16.gmra.mrb[0].mxu0 %v359
    %v1489 = vpop.f32.mrb[0].mxu0
    %v1490 = vadd.f32 %v559, %v1489
    %v1491 = vpop.f32.mrb[0].mxu0
    %v1492 = vadd.f32 %v563, %v1491
    %v1493 = vpop.f32.mrb[0].mxu0
    %v1494 = vpop.f32.mrb[0].mxu0
    %1495 = vdwg.mxu0
    %1496 = vmatprep.subr.bf16.mxu0 %v1232
    %1497 = vmatpush1.bf16.msra.mxu0 %v1231
    %1498 = vmatprep.subr.bf16.mxu0 %v1239
    %1499 = vmatpush1.bf16.msra.mxu0 %v1238
    %1500 = vmatprep.subr.bf16.mxu0 %v1246
    %1501 = vmatpush1.bf16.msra.mxu0 %v1245
    %1502 = vmatprep.subr.bf16.mxu0 %v1253
    %1503 = vmatpush1.bf16.msra.mxu0 %v1252
    %1504 = vmatprep.subr.bf16.mxu0 %v1260
    %1505 = vmatpush1.bf16.msra.mxu0 %v1259
    %1506 = vmatprep.subr.bf16.mxu0 %v1267
    %1507 = vmatpush1.bf16.msra.mxu0 %v1266
    %1508 = vmatprep.subr.bf16.mxu0 %v1274
    %1509 = vmatpush1.bf16.msra.mxu0 %v1273
    %1510 = vmatprep.subr.bf16.mxu0 %v1281
    %1511 = vmatpush1.bf16.msra.mxu0 %v1280
    %1512 = vmatprep.subr.bf16.mxu0 0
    %1513 = vmatpush1.bf16.msra.mxu0 0
    %1514 = vmatprep.subr.bf16.mxu0 0
    %1515 = vmatpush1.bf16.msra.mxu0 0
    %1516 = vmatprep.subr.bf16.mxu0 0
    %1517 = vmatpush1.bf16.msra.mxu0 0
    %1518 = vmatprep.subr.bf16.mxu0 0
    %1519 = vmatpush1.bf16.msra.mxu0 0
    %1520 = vmatprep.subr.bf16.mxu0 0
    %1521 = vmatpush1.bf16.msra.mxu0 0
    %1522 = vmatprep.subr.bf16.mxu0 0
    %1523 = vmatpush1.bf16.msra.mxu0 0
    %1524 = vmatprep.subr.bf16.mxu0 0
    %1525 = vmatpush1.bf16.msra.mxu0 0
    %1526 = vmatprep.subr.bf16.mxu0 0
    %1527 = vmatpush1.bf16.msra.mxu0 0
    %1528 = vmatprep.mubr.bf16.mxu0 0
    %1529 = vmatmul.mubr.bf16.gmra.mrb[0].mxu0 %v361
    %v1530 = vpop.f32.mrb[0].mxu0
    %v1531 = vadd.f32 %v1490, %v1530
    %v1532 = vpop.f32.mrb[0].mxu0
    %v1533 = vadd.f32 %v1492, %v1532
    %v1534 = vpop.f32.mrb[0].mxu0
    %v1535 = vpop.f32.mrb[0].mxu0
    %1536 = vdwg.mxu0
    %1537 = vmatprep.subr.bf16.mxu0 %v1122
    %1538 = vmatpush1.bf16.msra.mxu0 %v1121
    %1539 = vmatprep.subr.bf16.mxu0 %v1129
    %1540 = vmatpush1.bf16.msra.mxu0 %v1128
    %1541 = vmatprep.subr.bf16.mxu0 %v1136
    %1542 = vmatpush1.bf16.msra.mxu0 %v1135
    %1543 = vmatprep.subr.bf16.mxu0 %v1143
    %1544 = vmatpush1.bf16.msra.mxu0 %v1142
    %1545 = vmatprep.subr.bf16.mxu0 %v1150
    %1546 = vmatpush1.bf16.msra.mxu0 %v1149
    %1547 = vmatprep.subr.bf16.mxu0 %v1157
    %1548 = vmatpush1.bf16.msra.mxu0 %v1156
    %1549 = vmatprep.subr.bf16.mxu0 %v1164
    %1550 = vmatpush1.bf16.msra.mxu0 %v1163
    %1551 = vmatprep.subr.bf16.mxu0 %v1171
    %1552 = vmatpush1.bf16.msra.mxu0 %v1170
    %1553 = vmatprep.subr.bf16.mxu0 %v1178
    %1554 = vmatpush1.bf16.msra.mxu0 %v1177
    %1555 = vmatprep.subr.bf16.mxu0 %v1185
    %1556 = vmatpush1.bf16.msra.mxu0 %v1184
    %1557 = vmatprep.subr.bf16.mxu0 %v1192
    %1558 = vmatpush1.bf16.msra.mxu0 %v1191
    %1559 = vmatprep.subr.bf16.mxu0 %v1199
    %1560 = vmatpush1.bf16.msra.mxu0 %v1198
    %1561 = vmatprep.subr.bf16.mxu0 %v1206
    %1562 = vmatpush1.bf16.msra.mxu0 %v1205
    %1563 = vmatprep.subr.bf16.mxu0 %v1213
    %1564 = vmatpush1.bf16.msra.mxu0 %v1212
    %1565 = vmatprep.subr.bf16.mxu0 %v1220
    %1566 = vmatpush1.bf16.msra.mxu0 %v1219
    %1567 = vmatprep.subr.bf16.mxu0 %v1227
    %1568 = vmatpush1.bf16.msra.mxu0 %v1226
    %1569 = vmatprep.mubr.bf16.mxu0 %v360
    %1570 = vmatmul.mubr.bf16.gmra.mrb[0].mxu0 %v359
    %v1571 = vpop.f32.mrb[0].mxu0
    %v1572 = vadd.f32 %v567, %v1571
    %v1573 = vpop.f32.mrb[0].mxu0
    %v1574 = vadd.f32 %v571, %v1573
    %v1575 = vpop.f32.mrb[0].mxu0
    %v1576 = vpop.f32.mrb[0].mxu0
    %1577 = vdwg.mxu0
    %1578 = vmatprep.subr.bf16.mxu0 %v1234
    %1579 = vmatpush1.bf16.msra.mxu0 %v1233
    %1580 = vmatprep.subr.bf16.mxu0 %v1241
    %1581 = vmatpush1.bf16.msra.mxu0 %v1240
    %1582 = vmatprep.subr.bf16.mxu0 %v1248
    %1583 = vmatpush1.bf16.msra.mxu0 %v1247
    %1584 = vmatprep.subr.bf16.mxu0 %v1255
    %1585 = vmatpush1.bf16.msra.mxu0 %v1254
    %1586 = vmatprep.subr.bf16.mxu0 %v1262
    %1587 = vmatpush1.bf16.msra.mxu0 %v1261
    %1588 = vmatprep.subr.bf16.mxu0 %v1269
    %1589 = vmatpush1.bf16.msra.mxu0 %v1268
    %1590 = vmatprep.subr.bf16.mxu0 %v1276
    %1591 = vmatpush1.bf16.msra.mxu0 %v1275
    %1592 = vmatprep.subr.bf16.mxu0 %v1283
    %1593 = vmatpush1.bf16.msra.mxu0 %v1282
    %1594 = vmatprep.subr.bf16.mxu0 0
    %1595 = vmatpush1.bf16.msra.mxu0 0
    %1596 = vmatprep.subr.bf16.mxu0 0
    %1597 = vmatpush1.bf16.msra.mxu0 0
    %1598 = vmatprep.subr.bf16.mxu0 0
    %1599 = vmatpush1.bf16.msra.mxu0 0
    %1600 = vmatprep.subr.bf16.mxu0 0
    %1601 = vmatpush1.bf16.msra.mxu0 0
    %1602 = vmatprep.subr.bf16.mxu0 0
    %1603 = vmatpush1.bf16.msra.mxu0 0
    %1604 = vmatprep.subr.bf16.mxu0 0
    %1605 = vmatpush1.bf16.msra.mxu0 0
    %1606 = vmatprep.subr.bf16.mxu0 0
    %1607 = vmatpush1.bf16.msra.mxu0 0
    %1608 = vmatprep.subr.bf16.mxu0 0
    %1609 = vmatpush1.bf16.msra.mxu0 0
    %1610 = vmatprep.mubr.bf16.mxu0 0
    %1611 = vmatmul.mubr.bf16.gmra.mrb[0].mxu0 %v361
    %v1612 = vpop.f32.mrb[0].mxu0
    %v1613 = vadd.f32 %v1572, %v1612
    %v1614 = vpop.f32.mrb[0].mxu0
    %v1615 = vadd.f32 %v1574, %v1614
    %v1616 = vpop.f32.mrb[0].mxu0
    %v1617 = vpop.f32.mrb[0].mxu0
    %1618 = vdwg.mxu0
    %1619 = vmatprep.subr.bf16.mxu0 %v1124
    %1620 = vmatpush1.bf16.msra.mxu0 %v1123
    %1621 = vmatprep.subr.bf16.mxu0 %v1131
    %1622 = vmatpush1.bf16.msra.mxu0 %v1130
    %1623 = vmatprep.subr.bf16.mxu0 %v1138
    %1624 = vmatpush1.bf16.msra.mxu0 %v1137
    %1625 = vmatprep.subr.bf16.mxu0 %v1145
    %1626 = vmatpush1.bf16.msra.mxu0 %v1144
    %1627 = vmatprep.subr.bf16.mxu0 %v1152
    %1628 = vmatpush1.bf16.msra.mxu0 %v1151
    %1629 = vmatprep.subr.bf16.mxu0 %v1159
    %1630 = vmatpush1.bf16.msra.mxu0 %v1158
    %1631 = vmatprep.subr.bf16.mxu0 %v1166
    %1632 = vmatpush1.bf16.msra.mxu0 %v1165
    %1633 = vmatprep.subr.bf16.mxu0 %v1173
    %1634 = vmatpush1.bf16.msra.mxu0 %v1172
    %1635 = vmatprep.subr.bf16.mxu0 %v1180
    %1636 = vmatpush1.bf16.msra.mxu0 %v1179
    %1637 = vmatprep.subr.bf16.mxu0 %v1187
    %1638 = vmatpush1.bf16.msra.mxu0 %v1186
    %1639 = vmatprep.subr.bf16.mxu0 %v1194
    %1640 = vmatpush1.bf16.msra.mxu0 %v1193
    %1641 = vmatprep.subr.bf16.mxu0 %v1201
    %1642 = vmatpush1.bf16.msra.mxu0 %v1200
    %1643 = vmatprep.subr.bf16.mxu0 %v1208
    %1644 = vmatpush1.bf16.msra.mxu0 %v1207
    %1645 = vmatprep.subr.bf16.mxu0 %v1215
    %1646 = vmatpush1.bf16.msra.mxu0 %v1214
    %1647 = vmatprep.subr.bf16.mxu0 %v1222
    %1648 = vmatpush1.bf16.msra.mxu0 %v1221
    %1649 = vmatprep.subr.bf16.mxu0 %v1229
    %1650 = vmatpush1.bf16.msra.mxu0 %v1228
    %1651 = vmatprep.mubr.bf16.mxu0 %v360
    %1652 = vmatmul.mubr.bf16.gmra.mrb[0].mxu0 %v359
    %v1653 = vpop.f32.mrb[0].mxu0
    %v1654 = vadd.f32 %v575, %v1653
    %v1655 = vpop.f32.mrb[0].mxu0
    %v1656 = vadd.f32 %v579, %v1655
    %v1657 = vpop.f32.mrb[0].mxu0
    %v1658 = vpop.f32.mrb[0].mxu0
    %1659 = vdwg.mxu0
    %1660 = vmatprep.subr.bf16.mxu0 %v1236
    %1661 = vmatpush1.bf16.msra.mxu0 %v1235
    %1662 = vmatprep.subr.bf16.mxu0 %v1243
    %1663 = vmatpush1.bf16.msra.mxu0 %v1242
    %1664 = vmatprep.subr.bf16.mxu0 %v1250
    %1665 = vmatpush1.bf16.msra.mxu0 %v1249
    %1666 = vmatprep.subr.bf16.mxu0 %v1257
    %1667 = vmatpush1.bf16.msra.mxu0 %v1256
    %1668 = vmatprep.subr.bf16.mxu0 %v1264
    %1669 = vmatpush1.bf16.msra.mxu0 %v1263
    %1670 = vmatprep.subr.bf16.mxu0 %v1271
    %1671 = vmatpush1.bf16.msra.mxu0 %v1270
    %1672 = vmatprep.subr.bf16.mxu0 %v1278
    %1673 = vmatpush1.bf16.msra.mxu0 %v1277
    %1674 = vmatprep.subr.bf16.mxu0 %v1285
    %1675 = vmatpush1.bf16.msra.mxu0 %v1284
    %1676 = vmatprep.subr.bf16.mxu0 0
    %1677 = vmatpush1.bf16.msra.mxu0 0
    %1678 = vmatprep.subr.bf16.mxu0 0
    %1679 = vmatpush1.bf16.msra.mxu0 0
    %1680 = vmatprep.subr.bf16.mxu0 0
    %1681 = vmatpush1.bf16.msra.mxu0 0
    %1682 = vmatprep.subr.bf16.mxu0 0
    %1683 = vmatpush1.bf16.msra.mxu0 0
    %1684 = vmatprep.subr.bf16.mxu0 0
    %1685 = vmatpush1.bf16.msra.mxu0 0
    %1686 = vmatprep.subr.bf16.mxu0 0
    %1687 = vmatpush1.bf16.msra.mxu0 0
    %1688 = vmatprep.subr.bf16.mxu0 0
    %1689 = vmatpush1.bf16.msra.mxu0 0
    %1690 = vmatprep.subr.bf16.mxu0 0
    %1691 = vmatpush1.bf16.msra.mxu0 0
    %1692 = vmatprep.mubr.bf16.mxu0 0
    %1693 = vmatmul.mubr.bf16.gmra.mrb[0].mxu0 %v361
    %v1694 = vpop.f32.mrb[0].mxu0
    %v1695 = vadd.f32 %v1654, %v1694
    %v1696 = vpop.f32.mrb[0].mxu0
    %v1697 = vadd.f32 %v1656, %v1696
    %v1698 = vpop.f32.mrb[0].mxu0
    %v1699 = vpop.f32.mrb[0].mxu0
    %1700 = vdwg.mxu0
    %1701 = vmatprep.subr.bf16.mxu0 0
    %1702 = vmatpush1.bf16.msra.mxu0 %v1125
    %1703 = vmatprep.subr.bf16.mxu0 0
    %1704 = vmatpush1.bf16.msra.mxu0 %v1132
    %1705 = vmatprep.subr.bf16.mxu0 0
    %1706 = vmatpush1.bf16.msra.mxu0 %v1139
    %1707 = vmatprep.subr.bf16.mxu0 0
    %1708 = vmatpush1.bf16.msra.mxu0 %v1146
    %1709 = vmatprep.subr.bf16.mxu0 0
    %1710 = vmatpush1.bf16.msra.mxu0 %v1153
    %1711 = vmatprep.subr.bf16.mxu0 0
    %1712 = vmatpush1.bf16.msra.mxu0 %v1160
    %1713 = vmatprep.subr.bf16.mxu0 0
    %1714 = vmatpush1.bf16.msra.mxu0 %v1167
    %1715 = vmatprep.subr.bf16.mxu0 0
    %1716 = vmatpush1.bf16.msra.mxu0 %v1174
    %1717 = vmatprep.subr.bf16.mxu0 0
    %1718 = vmatpush1.bf16.msra.mxu0 %v1181
    %1719 = vmatprep.subr.bf16.mxu0 0
    %1720 = vmatpush1.bf16.msra.mxu0 %v1188
    %1721 = vmatprep.subr.bf16.mxu0 0
    %1722 = vmatpush1.bf16.msra.mxu0 %v1195
    %1723 = vmatprep.subr.bf16.mxu0 0
    %1724 = vmatpush1.bf16.msra.mxu0 %v1202
    %1725 = vmatprep.subr.bf16.mxu0 0
    %1726 = vmatpush1.bf16.msra.mxu0 %v1209
    %1727 = vmatprep.subr.bf16.mxu0 0
    %1728 = vmatpush1.bf16.msra.mxu0 %v1216
    %1729 = vmatprep.subr.bf16.mxu0 0
    %1730 = vmatpush1.bf16.msra.mxu0 %v1223
    %1731 = vmatprep.subr.bf16.mxu0 0
    %1732 = vmatpush1.bf16.msra.mxu0 %v1230
    %1733 = vmatprep.mubr.bf16.mxu0 %v360
    %1734 = vmatmul.mubr.bf16.gmra.mrb[0].mxu0 %v359
    %v1735 = vpop.f32.mrb[0].mxu0
    %v1736 = vadd.f32 %v583, %v1735
    %v1737 = vpop.f32.mrb[0].mxu0
    %v1738 = vpop.f32.mrb[0].mxu0
    %v1739 = vpop.f32.mrb[0].mxu0
    %1740 = vdwg.mxu0
    %1741 = vmatprep.subr.bf16.mxu0 0
    %1742 = vmatpush1.bf16.msra.mxu0 %v1237
    %1743 = vmatprep.subr.bf16.mxu0 0
    %1744 = vmatpush1.bf16.msra.mxu0 %v1244
    %1745 = vmatprep.subr.bf16.mxu0 0
    %1746 = vmatpush1.bf16.msra.mxu0 %v1251
    %1747 = vmatprep.subr.bf16.mxu0 0
    %1748 = vmatpush1.bf16.msra.mxu0 %v1258
    %1749 = vmatprep.subr.bf16.mxu0 0
    %1750 = vmatpush1.bf16.msra.mxu0 %v1265
    %1751 = vmatprep.subr.bf16.mxu0 0
    %1752 = vmatpush1.bf16.msra.mxu0 %v1272
    %1753 = vmatprep.subr.bf16.mxu0 0
    %1754 = vmatpush1.bf16.msra.mxu0 %v1279
    %1755 = vmatprep.subr.bf16.mxu0 0
    %1756 = vmatpush1.bf16.msra.mxu0 %v1286
    %1757 = vmatprep.subr.bf16.mxu0 0
    %1758 = vmatpush1.bf16.msra.mxu0 0
    %1759 = vmatprep.subr.bf16.mxu0 0
    %1760 = vmatpush1.bf16.msra.mxu0 0
    %1761 = vmatprep.subr.bf16.mxu0 0
    %1762 = vmatpush1.bf16.msra.mxu0 0
    %1763 = vmatprep.subr.bf16.mxu0 0
    %1764 = vmatpush1.bf16.msra.mxu0 0
    %1765 = vmatprep.subr.bf16.mxu0 0
    %1766 = vmatpush1.bf16.msra.mxu0 0
    %1767 = vmatprep.subr.bf16.mxu0 0
    %1768 = vmatpush1.bf16.msra.mxu0 0
    %1769 = vmatprep.subr.bf16.mxu0 0
    %1770 = vmatpush1.bf16.msra.mxu0 0
    %1771 = vmatprep.subr.bf16.mxu0 0
    %1772 = vmatpush1.bf16.msra.mxu0 0
    %1773 = vmatprep.mubr.bf16.mxu0 0
    %1774 = vmatmul.mubr.bf16.gmra.mrb[0].mxu0 %v361
    %v1775 = vpop.f32.mrb[0].mxu0
    %v1776 = vadd.f32 %v1736, %v1775
    %v1777 = vpop.f32.mrb[0].mxu0
    %v1778 = vpop.f32.mrb[0].mxu0
    %v1779 = vpop.f32.mrb[0].mxu0
    %1780 = vdwg.mxu0
    %v1781 = vsub.f32 0.0, %v1531
    %v1782 = vsub.f32 0.0, %v1533
    %v1783 = vsub.f32 0.0, %v1613
    %v1784 = vsub.f32 0.0, %v1615
    %v1785 = vsub.f32 0.0, %v1695
    %v1786 = vsub.f32 0.0, %v1697
    %v1787 = vsub.f32 0.0, %v1776
    %v1788 = vmul.f32 %v1781, 1.442695
    %v1789 = vpow.pop %v1788
    %v1790 = vmul.f32 %v1782, 1.442695
    %v1791 = vpow.pop %v1790
    %v1792 = vmul.f32 %v1783, 1.442695
    %v1793 = vpow.pop %v1792
    %v1794 = vmul.f32 %v1784, 1.442695
    %v1795 = vpow.pop %v1794
    %v1796 = vmul.f32 %v1785, 1.442695
    %v1797 = vpow.pop %v1796
    %v1798 = vmul.f32 %v1786, 1.442695
    %v1799 = vpow.pop %v1798
    %v1800 = vmul.f32 %v1787, 1.442695
    %v1801 = vpow.pop %v1800
    %v1802 = vadd.f32 %v1789, 1.0
    %v1803 = vadd.f32 %v1791, 1.0
    %v1804 = vadd.f32 %v1793, 1.0
    %v1805 = vadd.f32 %v1795, 1.0
    %v1806 = vadd.f32 %v1797, 1.0
    %v1807 = vadd.f32 %v1799, 1.0
    %v1808 = vadd.f32 %v1801, 1.0
    %v1809 = vrcp.pop %v1802
    %v1810 = vrcp.pop %v1803
    %v1811 = vrcp.pop %v1804
    %v1812 = vrcp.pop %v1805
    %v1813 = vrcp.pop %v1806
    %v1814 = vrcp.pop %v1807
    %v1815 = vrcp.pop %v1808
    %1816 = vst [vmem:[#allocation2] sm:$0xff] %v1809
    %1817 = vst [vmem:[#allocation2 + $0x8] sm:$0xff] %v1810
    %1818 = vst [vmem:[#allocation2 + $0x10] sm:$0xff] %v1811
    %1819 = vst [vmem:[#allocation2 + $0x18] sm:$0xff] %v1812
    %1820 = vst [vmem:[#allocation2 + $0x20] sm:$0xff] %v1813
    %1821 = vst [vmem:[#allocation2 + $0x28] sm:$0xff] %v1814
    %vm1822 = vcmask 130048
    %1823 = vst.msk [vmem:[#allocation2 + $0x30] sm:$0xff] %vm1822, %v1815
    // Predicated region
    $region30: #{tpu_custom_call.1} parent=1 // pred_check
      _
    $region31: #{tpu_custom_call.1} parent=1 // pred_check_branch
      %1825 = sbr.rel (0) target = $region33
    $region32: #{tpu_custom_call.1} parent=1 // pred_region
      %s1827 = ssub.s32 896, 896
      %1828 = vsyncadd [#allocation3], %s1827
      %s1830 = sshll.u32 [#allocation2], 4
      %s1831 = int_to_ptr.vmem [resolvable:$true] %s1830
      %1833 = dma.vmem_to_hbm [thread:$0]  %s1831, 896, %s7, [#allocation3]
    $region33: #{tpu_custom_call.1} parent=1 // pred_fallthru
      _
    // Predicated region
    $region34: #{tpu_custom_call.1} parent=1 // pred_check
      _
    $region35: #{tpu_custom_call.1} parent=1 // pred_check_branch
      %1835 = sbr.rel (0) target = $region37
    $region36: #{tpu_custom_call.1} parent=1 // pred_region
      %1836 = dma.done [#allocation3], 896
    $region37: #{tpu_custom_call.1} parent=1 // pred_fallthru
      _
    %1837 = vsyncpa [#allocation3], 1

</llo_original>
